<compile_context>
chip_gen: v7x
topology: tpu7x:2x2x1
jax: 0.10.0
libtpu: 0.0.40
codegen_flags: <defaults>
</compile_context>

<pallas_src>
import functools

import jax
import jax.numpy as jnp
from jax.experimental import pallas as pl
from jax.experimental.pallas import tpu as pltpu


# ----------------------------------------------------------------------------
# Fused Pallas kernel: projections -> concat -> CNN fusion -> head
# ----------------------------------------------------------------------------
def _fused_kernel(text_ref, audio_ref, vision_ref,
                  wt_ref, bt_ref, wa_ref, ba_ref, wv_ref, bv_ref,
                  *rest, kernel_heights, seq_len):
    n_conv = len(kernel_heights)
    conv_refs = rest[:2 * n_conv]                       # (w_flat, b) pairs
    we_ref, be_ref, w1_ref, b1_ref, w2_ref, b2_ref, o_ref = rest[2 * n_conv:]

    H = wt_ref.shape[1]
    S = seq_len
    B = text_ref.shape[0] // S
    L = 3 * S                                           # fused sequence length

    def lin(x, w_ref, b_ref, relu=False):
        y = jnp.dot(x, w_ref[...], preferred_element_type=jnp.float32)
        y = y + b_ref[...]                              # (1, N) broadcast
        if relu:
            y = jnp.maximum(y, 0.0)
        return y

    # --- unity-dim projections, batched over all B*S rows (one dot each) ----
    t = lin(text_ref[...], wt_ref, bt_ref)              # (B*S, H)
    a = lin(audio_ref[...], wa_ref, ba_ref)             # (B*S, H)
    v = lin(vision_ref[...], wv_ref, bv_ref)            # (B*S, H)

    # --- per-batch concat along time: fusion[b] = [t_b; a_b; v_b]  (3S, H) ---
    # TODO(synk): recon_feature / fusion_trans are external MulT TransformerEncoders
    # whose definitions are not provided; they are identity pass-throughs here.
    fusion_rows = []
    for b in range(B):                                  # static, tiny B
        sl = slice(b * S, (b + 1) * S)
        fusion_rows.append(jnp.concatenate([t[sl], a[sl], v[sl]], axis=0))

    # --- CNNFusionBlock: conv(kh, H) + ReLU + max-pool over time, per kh -----
    pooled_parts = []
    for c, kh in enumerate(kernel_heights):
        wc_ref = conv_refs[2 * c]                       # (kh*H, H) im2col weight
        bc_ref = conv_refs[2 * c + 1]                   # (1, H)
        Lout = L - kh + 1
        # im2col slab for all batches: (B*Lout, kh*H) -> single MXU matmul.
        cols = jnp.concatenate(
            [jnp.concatenate([fb[i:i + Lout, :] for i in range(kh)], axis=1)
             for fb in fusion_rows],
            axis=0)
        y = jnp.dot(cols, wc_ref[...], preferred_element_type=jnp.float32)
        y = jnp.maximum(y + bc_ref[...], 0.0)           # bias + ReLU, f32
        # max-pool over time, per batch
        pooled_b = [jnp.max(y[b * Lout:(b + 1) * Lout, :], axis=0, keepdims=True)
                    for b in range(B)]
        pooled_parts.append(jnp.concatenate(pooled_b, axis=0))   # (B, H)

    all_out = jnp.concatenate(pooled_parts, axis=1)     # (B, 3H)
    # dropouts -> identity (eval)

    embd = lin(all_out, we_ref, be_ref, relu=True)      # (B, H)
    h = lin(embd, w1_ref, b1_ref, relu=True)            # (B, H/2)
    pred = lin(h, w2_ref, b2_ref, relu=False)           # (B, 1)
    o_ref[...] = pred.astype(o_ref.dtype)


# ----------------------------------------------------------------------------
# Parameters (deterministic synthetic init)
# ----------------------------------------------------------------------------
def init_params(key, Dt, Da, Dv, H, kernel_heights=(3, 4, 5)):
    # 3 unity linears + len(kernel_heights) convs + embd + post1 + post2,
    # 2 keys each.
    n_keys = 2 * (3 + len(kernel_heights) + 3)
    ks = iter(jax.random.split(key, n_keys))

    def lin(fan_in, fan_out):
        w = jax.random.normal(next(ks), (fan_in, fan_out), jnp.float32) / jnp.sqrt(
            jnp.float32(fan_in))
        b = jax.random.normal(next(ks), (fan_out,), jnp.float32) * 0.01
        return w, b

    convs = []
    for kh in kernel_heights:
        # PyTorch Conv2d weight (C_out, 1, kh, H) -> stored here as (kh, H, C_out)
        w = jax.random.normal(next(ks), (kh, H, H), jnp.float32) / jnp.sqrt(
            jnp.float32(kh * H))
        b = jax.random.normal(next(ks), (H,), jnp.float32) * 0.01
        convs.append((w, b))

    return {
        "hidden": H,
        "kernel_heights": tuple(kernel_heights),
        "text_unity": lin(Dt, H),
        "audio_unity": lin(Da, H),
        "video_unity": lin(Dv, H),
        "convs": convs,
        "embd": lin(len(kernel_heights) * H, H),
        "post1": lin(H, H // 2),
        "post2": lin(H // 2, 1),
    }


# ----------------------------------------------------------------------------
# Forward pass: one fused pallas_call
# ----------------------------------------------------------------------------
def mul_trans_forward(params, text, audio, vision):
    H = params["hidden"]
    khs = params["kernel_heights"]
    B, S, Dt = text.shape
    Da = audio.shape[2]
    Dv = vision.shape[2]

    # TODO(synk): BertTextEncoder / AlignSubNet('ctc') are external modules not
    # provided; inputs are treated as already-aligned per-modality feature sequences.

    def b2d(b):
        return b.reshape(1, -1)

    wt, bt = params["text_unity"]
    wa, ba = params["audio_unity"]
    wv, bv = params["video_unity"]
    we, be = params["embd"]
    w1, b1 = params["post1"]
    w2, b2 = params["post2"]

    conv_args = []
    for kh, (wc, bc) in zip(khs, params["convs"]):
        conv_args.append(wc.reshape(kh * H, H))   # im2col-flattened conv weight
        conv_args.append(b2d(bc))

    args = [
        text.reshape(B * S, Dt),
        audio.reshape(B * S, Da),
        vision.reshape(B * S, Dv),
        wt, b2d(bt), wa, b2d(ba), wv, b2d(bv),
        *conv_args,
        we, b2d(be), w1, b2d(b1), w2, b2d(b2),
    ]

    vmem_spec = pl.BlockSpec(memory_space=pltpu.MemorySpace.VMEM)
    pred = pl.pallas_call(
        functools.partial(_fused_kernel, kernel_heights=khs, seq_len=S),
        out_shape=jax.ShapeDtypeStruct((B, 1), jnp.float32),
        in_specs=[vmem_spec] * len(args),
        out_specs=vmem_spec,
    )(*args)
    return {"prediction": pred}


# ----------------------------------------------------------------------------
if __name__ == "__main__":
    B, S = 2, 8
    Dt, Da, Dv = 32, 16, 24
    H = 32

    key = jax.random.PRNGKey(0)
    k_par, k_t, k_a, k_v = jax.random.split(key, 4)

    params = init_params(k_par, Dt, Da, Dv, H)
    text = jax.random.normal(k_t, (B, S, Dt), jnp.float32)
    audio = jax.random.normal(k_a, (B, S, Da), jnp.float32)
    vision = jax.random.normal(k_v, (B, S, Dv), jnp.float32)

    out = mul_trans_forward(params, text, audio, vision)
    pred = jax.block_until_ready(out["prediction"])
    assert pred.shape == (B, 1)
    assert bool(jnp.all(jnp.isfinite(pred)))
    print("KERNEL_OK")
</pallas_src>

<mosaic_0001>
module attributes {stable_mosaic.version = 11 : i64} {
  func.func @_fused_kernel(%arg0: memref<16x32xf32, #tpu.memory_space<vmem>>, %arg1: memref<16x16xf32, #tpu.memory_space<vmem>>, %arg2: memref<16x24xf32, #tpu.memory_space<vmem>>, %arg3: memref<32x32xf32, #tpu.memory_space<vmem>>, %arg4: memref<1x32xf32, #tpu.memory_space<vmem>>, %arg5: memref<16x32xf32, #tpu.memory_space<vmem>>, %arg6: memref<1x32xf32, #tpu.memory_space<vmem>>, %arg7: memref<24x32xf32, #tpu.memory_space<vmem>>, %arg8: memref<1x32xf32, #tpu.memory_space<vmem>>, %arg9: memref<96x32xf32, #tpu.memory_space<vmem>>, %arg10: memref<1x32xf32, #tpu.memory_space<vmem>>, %arg11: memref<128x32xf32, #tpu.memory_space<vmem>>, %arg12: memref<1x32xf32, #tpu.memory_space<vmem>>, %arg13: memref<160x32xf32, #tpu.memory_space<vmem>>, %arg14: memref<1x32xf32, #tpu.memory_space<vmem>>, %arg15: memref<96x32xf32, #tpu.memory_space<vmem>>, %arg16: memref<1x32xf32, #tpu.memory_space<vmem>>, %arg17: memref<32x16xf32, #tpu.memory_space<vmem>>, %arg18: memref<1x16xf32, #tpu.memory_space<vmem>>, %arg19: memref<16x1xf32, #tpu.memory_space<vmem>>, %arg20: memref<1x1xf32, #tpu.memory_space<vmem>>, %arg21: memref<2x1xf32, #tpu.memory_space<vmem>>) attributes {dimension_semantics = [], scalar_prefetch = 0 : i64, scratch_operands = 0 : i64, tpu.core_type = #tpu.core_type<tc>} {
    %c0 = arith.constant 0 : index
    %c0_0 = arith.constant 0 : index
    %0 = vector.load %arg0[%c0, %c0_0] : memref<16x32xf32, #tpu.memory_space<vmem>>, vector<16x32xf32>
    %c0_1 = arith.constant 0 : index
    %c0_2 = arith.constant 0 : index
    %1 = vector.load %arg3[%c0_1, %c0_2] : memref<32x32xf32, #tpu.memory_space<vmem>>, vector<32x32xf32>
    %cst = arith.constant dense<0.000000e+00> : vector<16x32xf32>
    %2 = tpu.matmul %0, %1, %cst {dimension_numbers = #tpu.dot_dimension_numbers<[1], [0], [0], [1], [0, 0, 1, 1], [], []>} : vector<16x32xf32>, vector<32x32xf32>, vector<16x32xf32> -> vector<16x32xf32>
    %c0_3 = arith.constant 0 : index
    %c0_4 = arith.constant 0 : index
    %3 = vector.load %arg4[%c0_3, %c0_4] : memref<1x32xf32, #tpu.memory_space<vmem>>, vector<1x32xf32>
    %4 = vector.broadcast %3 : vector<1x32xf32> to vector<16x32xf32>
    %5 = arith.addf %2, %4 : vector<16x32xf32>
    %c0_5 = arith.constant 0 : index
    %c0_6 = arith.constant 0 : index
    %6 = vector.load %arg1[%c0_5, %c0_6] : memref<16x16xf32, #tpu.memory_space<vmem>>, vector<16x16xf32>
    %c0_7 = arith.constant 0 : index
    %c0_8 = arith.constant 0 : index
    %7 = vector.load %arg5[%c0_7, %c0_8] : memref<16x32xf32, #tpu.memory_space<vmem>>, vector<16x32xf32>
    %cst_9 = arith.constant dense<0.000000e+00> : vector<16x32xf32>
    %8 = tpu.matmul %6, %7, %cst_9 {dimension_numbers = #tpu.dot_dimension_numbers<[1], [0], [0], [1], [0, 0, 1, 1], [], []>} : vector<16x16xf32>, vector<16x32xf32>, vector<16x32xf32> -> vector<16x32xf32>
    %c0_10 = arith.constant 0 : index
    %c0_11 = arith.constant 0 : index
    %9 = vector.load %arg6[%c0_10, %c0_11] : memref<1x32xf32, #tpu.memory_space<vmem>>, vector<1x32xf32>
    %10 = vector.broadcast %9 : vector<1x32xf32> to vector<16x32xf32>
    %11 = arith.addf %8, %10 : vector<16x32xf32>
    %c0_12 = arith.constant 0 : index
    %c0_13 = arith.constant 0 : index
    %12 = vector.load %arg2[%c0_12, %c0_13] : memref<16x24xf32, #tpu.memory_space<vmem>>, vector<16x24xf32>
    %c0_14 = arith.constant 0 : index
    %c0_15 = arith.constant 0 : index
    %13 = vector.load %arg7[%c0_14, %c0_15] : memref<24x32xf32, #tpu.memory_space<vmem>>, vector<24x32xf32>
    %cst_16 = arith.constant dense<0.000000e+00> : vector<16x32xf32>
    %14 = tpu.matmul %12, %13, %cst_16 {dimension_numbers = #tpu.dot_dimension_numbers<[1], [0], [0], [1], [0, 0, 1, 1], [], []>} : vector<16x24xf32>, vector<24x32xf32>, vector<16x32xf32> -> vector<16x32xf32>
    %c0_17 = arith.constant 0 : index
    %c0_18 = arith.constant 0 : index
    %15 = vector.load %arg8[%c0_17, %c0_18] : memref<1x32xf32, #tpu.memory_space<vmem>>, vector<1x32xf32>
    %16 = vector.broadcast %15 : vector<1x32xf32> to vector<16x32xf32>
    %17 = arith.addf %14, %16 : vector<16x32xf32>
    %18 = vector.extract_strided_slice %5 {offsets = [0, 0], sizes = [8, 32], strides = [1, 1]} : vector<16x32xf32> to vector<8x32xf32>
    %19 = vector.extract_strided_slice %11 {offsets = [0, 0], sizes = [8, 32], strides = [1, 1]} : vector<16x32xf32> to vector<8x32xf32>
    %20 = vector.extract_strided_slice %17 {offsets = [0, 0], sizes = [8, 32], strides = [1, 1]} : vector<16x32xf32> to vector<8x32xf32>
    %21 = tpu.concatenate %18, %19, %20 in 0 : vector<8x32xf32>, vector<8x32xf32>, vector<8x32xf32> -> vector<24x32xf32>
    %22 = vector.extract_strided_slice %5 {offsets = [8, 0], sizes = [8, 32], strides = [1, 1]} : vector<16x32xf32> to vector<8x32xf32>
    %23 = vector.extract_strided_slice %11 {offsets = [8, 0], sizes = [8, 32], strides = [1, 1]} : vector<16x32xf32> to vector<8x32xf32>
    %24 = vector.extract_strided_slice %17 {offsets = [8, 0], sizes = [8, 32], strides = [1, 1]} : vector<16x32xf32> to vector<8x32xf32>
    %25 = tpu.concatenate %22, %23, %24 in 0 : vector<8x32xf32>, vector<8x32xf32>, vector<8x32xf32> -> vector<24x32xf32>
    %26 = vector.extract_strided_slice %21 {offsets = [0, 0], sizes = [22, 32], strides = [1, 1]} : vector<24x32xf32> to vector<22x32xf32>
    %27 = vector.extract_strided_slice %21 {offsets = [1, 0], sizes = [22, 32], strides = [1, 1]} : vector<24x32xf32> to vector<22x32xf32>
    %28 = vector.extract_strided_slice %21 {offsets = [2, 0], sizes = [22, 32], strides = [1, 1]} : vector<24x32xf32> to vector<22x32xf32>
    %29 = tpu.concatenate %26, %27, %28 in 1 : vector<22x32xf32>, vector<22x32xf32>, vector<22x32xf32> -> vector<22x96xf32>
    %30 = vector.extract_strided_slice %25 {offsets = [0, 0], sizes = [22, 32], strides = [1, 1]} : vector<24x32xf32> to vector<22x32xf32>
    %31 = vector.extract_strided_slice %25 {offsets = [1, 0], sizes = [22, 32], strides = [1, 1]} : vector<24x32xf32> to vector<22x32xf32>
    %32 = vector.extract_strided_slice %25 {offsets = [2, 0], sizes = [22, 32], strides = [1, 1]} : vector<24x32xf32> to vector<22x32xf32>
    %33 = tpu.concatenate %30, %31, %32 in 1 : vector<22x32xf32>, vector<22x32xf32>, vector<22x32xf32> -> vector<22x96xf32>
    %34 = tpu.concatenate %29, %33 in 0 : vector<22x96xf32>, vector<22x96xf32> -> vector<44x96xf32>
    %c0_19 = arith.constant 0 : index
    %c0_20 = arith.constant 0 : index
    %35 = vector.load %arg9[%c0_19, %c0_20] : memref<96x32xf32, #tpu.memory_space<vmem>>, vector<96x32xf32>
    %cst_21 = arith.constant dense<0.000000e+00> : vector<44x32xf32>
    %36 = tpu.matmul %34, %35, %cst_21 {dimension_numbers = #tpu.dot_dimension_numbers<[1], [0], [0], [1], [0, 0, 1, 1], [], []>} : vector<44x96xf32>, vector<96x32xf32>, vector<44x32xf32> -> vector<44x32xf32>
    %c0_22 = arith.constant 0 : index
    %c0_23 = arith.constant 0 : index
    %37 = vector.load %arg10[%c0_22, %c0_23] : memref<1x32xf32, #tpu.memory_space<vmem>>, vector<1x32xf32>
    %38 = vector.broadcast %37 : vector<1x32xf32> to vector<44x32xf32>
    %39 = arith.addf %36, %38 : vector<44x32xf32>
    %cst_24 = arith.constant 0.000000e+00 : f32
    %40 = vector.broadcast %cst_24 : f32 to vector<44x32xf32>
    %41 = arith.maximumf %39, %40 : vector<44x32xf32>
    %42 = vector.extract_strided_slice %41 {offsets = [0, 0], sizes = [22, 32], strides = [1, 1]} : vector<44x32xf32> to vector<22x32xf32>
    %cst_25 = arith.constant dense<0xFF800000> : vector<32xf32>
    %43 = vector.multi_reduction <maximumf>, %42, %cst_25 [0] : vector<22x32xf32> to vector<32xf32>
    %44 = vector.shape_cast %43 : vector<32xf32> to vector<1x32xf32>
    %45 = vector.extract_strided_slice %41 {offsets = [22, 0], sizes = [22, 32], strides = [1, 1]} : vector<44x32xf32> to vector<22x32xf32>
    %cst_26 = arith.constant dense<0xFF800000> : vector<32xf32>
    %46 = vector.multi_reduction <maximumf>, %45, %cst_26 [0] : vector<22x32xf32> to vector<32xf32>
    %47 = vector.shape_cast %46 : vector<32xf32> to vector<1x32xf32>
    %48 = tpu.concatenate %44, %47 in 0 : vector<1x32xf32>, vector<1x32xf32> -> vector<2x32xf32>
    %49 = vector.extract_strided_slice %21 {offsets = [0, 0], sizes = [21, 32], strides = [1, 1]} : vector<24x32xf32> to vector<21x32xf32>
    %50 = vector.extract_strided_slice %21 {offsets = [1, 0], sizes = [21, 32], strides = [1, 1]} : vector<24x32xf32> to vector<21x32xf32>
    %51 = vector.extract_strided_slice %21 {offsets = [2, 0], sizes = [21, 32], strides = [1, 1]} : vector<24x32xf32> to vector<21x32xf32>
    %52 = vector.extract_strided_slice %21 {offsets = [3, 0], sizes = [21, 32], strides = [1, 1]} : vector<24x32xf32> to vector<21x32xf32>
    %53 = tpu.concatenate %49, %50, %51, %52 in 1 : vector<21x32xf32>, vector<21x32xf32>, vector<21x32xf32>, vector<21x32xf32> -> vector<21x128xf32>
    %54 = vector.extract_strided_slice %25 {offsets = [0, 0], sizes = [21, 32], strides = [1, 1]} : vector<24x32xf32> to vector<21x32xf32>
    %55 = vector.extract_strided_slice %25 {offsets = [1, 0], sizes = [21, 32], strides = [1, 1]} : vector<24x32xf32> to vector<21x32xf32>
    %56 = vector.extract_strided_slice %25 {offsets = [2, 0], sizes = [21, 32], strides = [1, 1]} : vector<24x32xf32> to vector<21x32xf32>
    %57 = vector.extract_strided_slice %25 {offsets = [3, 0], sizes = [21, 32], strides = [1, 1]} : vector<24x32xf32> to vector<21x32xf32>
    %58 = tpu.concatenate %54, %55, %56, %57 in 1 : vector<21x32xf32>, vector<21x32xf32>, vector<21x32xf32>, vector<21x32xf32> -> vector<21x128xf32>
    %59 = tpu.concatenate %53, %58 in 0 : vector<21x128xf32>, vector<21x128xf32> -> vector<42x128xf32>
    %c0_27 = arith.constant 0 : index
    %c0_28 = arith.constant 0 : index
    %60 = vector.load %arg11[%c0_27, %c0_28] : memref<128x32xf32, #tpu.memory_space<vmem>>, vector<128x32xf32>
    %cst_29 = arith.constant dense<0.000000e+00> : vector<42x32xf32>
    %61 = tpu.matmul %59, %60, %cst_29 {dimension_numbers = #tpu.dot_dimension_numbers<[1], [0], [0], [1], [0, 0, 1, 1], [], []>} : vector<42x128xf32>, vector<128x32xf32>, vector<42x32xf32> -> vector<42x32xf32>
    %c0_30 = arith.constant 0 : index
    %c0_31 = arith.constant 0 : index
    %62 = vector.load %arg12[%c0_30, %c0_31] : memref<1x32xf32, #tpu.memory_space<vmem>>, vector<1x32xf32>
    %63 = vector.broadcast %62 : vector<1x32xf32> to vector<42x32xf32>
    %64 = arith.addf %61, %63 : vector<42x32xf32>
    %cst_32 = arith.constant 0.000000e+00 : f32
    %65 = vector.broadcast %cst_32 : f32 to vector<42x32xf32>
    %66 = arith.maximumf %64, %65 : vector<42x32xf32>
    %67 = vector.extract_strided_slice %66 {offsets = [0, 0], sizes = [21, 32], strides = [1, 1]} : vector<42x32xf32> to vector<21x32xf32>
    %cst_33 = arith.constant dense<0xFF800000> : vector<32xf32>
    %68 = vector.multi_reduction <maximumf>, %67, %cst_33 [0] : vector<21x32xf32> to vector<32xf32>
    %69 = vector.shape_cast %68 : vector<32xf32> to vector<1x32xf32>
    %70 = vector.extract_strided_slice %66 {offsets = [21, 0], sizes = [21, 32], strides = [1, 1]} : vector<42x32xf32> to vector<21x32xf32>
    %cst_34 = arith.constant dense<0xFF800000> : vector<32xf32>
    %71 = vector.multi_reduction <maximumf>, %70, %cst_34 [0] : vector<21x32xf32> to vector<32xf32>
    %72 = vector.shape_cast %71 : vector<32xf32> to vector<1x32xf32>
    %73 = tpu.concatenate %69, %72 in 0 : vector<1x32xf32>, vector<1x32xf32> -> vector<2x32xf32>
    %74 = vector.extract_strided_slice %21 {offsets = [0, 0], sizes = [20, 32], strides = [1, 1]} : vector<24x32xf32> to vector<20x32xf32>
    %75 = vector.extract_strided_slice %21 {offsets = [1, 0], sizes = [20, 32], strides = [1, 1]} : vector<24x32xf32> to vector<20x32xf32>
    %76 = vector.extract_strided_slice %21 {offsets = [2, 0], sizes = [20, 32], strides = [1, 1]} : vector<24x32xf32> to vector<20x32xf32>
    %77 = vector.extract_strided_slice %21 {offsets = [3, 0], sizes = [20, 32], strides = [1, 1]} : vector<24x32xf32> to vector<20x32xf32>
    %78 = vector.extract_strided_slice %21 {offsets = [4, 0], sizes = [20, 32], strides = [1, 1]} : vector<24x32xf32> to vector<20x32xf32>
    %79 = tpu.concatenate %74, %75, %76, %77, %78 in 1 : vector<20x32xf32>, vector<20x32xf32>, vector<20x32xf32>, vector<20x32xf32>, vector<20x32xf32> -> vector<20x160xf32>
    %80 = vector.extract_strided_slice %25 {offsets = [0, 0], sizes = [20, 32], strides = [1, 1]} : vector<24x32xf32> to vector<20x32xf32>
    %81 = vector.extract_strided_slice %25 {offsets = [1, 0], sizes = [20, 32], strides = [1, 1]} : vector<24x32xf32> to vector<20x32xf32>
    %82 = vector.extract_strided_slice %25 {offsets = [2, 0], sizes = [20, 32], strides = [1, 1]} : vector<24x32xf32> to vector<20x32xf32>
    %83 = vector.extract_strided_slice %25 {offsets = [3, 0], sizes = [20, 32], strides = [1, 1]} : vector<24x32xf32> to vector<20x32xf32>
    %84 = vector.extract_strided_slice %25 {offsets = [4, 0], sizes = [20, 32], strides = [1, 1]} : vector<24x32xf32> to vector<20x32xf32>
    %85 = tpu.concatenate %80, %81, %82, %83, %84 in 1 : vector<20x32xf32>, vector<20x32xf32>, vector<20x32xf32>, vector<20x32xf32>, vector<20x32xf32> -> vector<20x160xf32>
    %86 = tpu.concatenate %79, %85 in 0 : vector<20x160xf32>, vector<20x160xf32> -> vector<40x160xf32>
    %c0_35 = arith.constant 0 : index
    %c0_36 = arith.constant 0 : index
    %87 = vector.load %arg13[%c0_35, %c0_36] : memref<160x32xf32, #tpu.memory_space<vmem>>, vector<160x32xf32>
    %cst_37 = arith.constant dense<0.000000e+00> : vector<40x32xf32>
    %88 = tpu.matmul %86, %87, %cst_37 {dimension_numbers = #tpu.dot_dimension_numbers<[1], [0], [0], [1], [0, 0, 1, 1], [], []>} : vector<40x160xf32>, vector<160x32xf32>, vector<40x32xf32> -> vector<40x32xf32>
    %c0_38 = arith.constant 0 : index
    %c0_39 = arith.constant 0 : index
    %89 = vector.load %arg14[%c0_38, %c0_39] : memref<1x32xf32, #tpu.memory_space<vmem>>, vector<1x32xf32>
    %90 = vector.broadcast %89 : vector<1x32xf32> to vector<40x32xf32>
    %91 = arith.addf %88, %90 : vector<40x32xf32>
    %cst_40 = arith.constant 0.000000e+00 : f32
    %92 = vector.broadcast %cst_40 : f32 to vector<40x32xf32>
    %93 = arith.maximumf %91, %92 : vector<40x32xf32>
    %94 = vector.extract_strided_slice %93 {offsets = [0, 0], sizes = [20, 32], strides = [1, 1]} : vector<40x32xf32> to vector<20x32xf32>
    %cst_41 = arith.constant dense<0xFF800000> : vector<32xf32>
    %95 = vector.multi_reduction <maximumf>, %94, %cst_41 [0] : vector<20x32xf32> to vector<32xf32>
    %96 = vector.shape_cast %95 : vector<32xf32> to vector<1x32xf32>
    %97 = vector.extract_strided_slice %93 {offsets = [20, 0], sizes = [20, 32], strides = [1, 1]} : vector<40x32xf32> to vector<20x32xf32>
    %cst_42 = arith.constant dense<0xFF800000> : vector<32xf32>
    %98 = vector.multi_reduction <maximumf>, %97, %cst_42 [0] : vector<20x32xf32> to vector<32xf32>
    %99 = vector.shape_cast %98 : vector<32xf32> to vector<1x32xf32>
    %100 = tpu.concatenate %96, %99 in 0 : vector<1x32xf32>, vector<1x32xf32> -> vector<2x32xf32>
    %101 = tpu.concatenate %48, %73, %100 in 1 : vector<2x32xf32>, vector<2x32xf32>, vector<2x32xf32> -> vector<2x96xf32>
    %c0_43 = arith.constant 0 : index
    %c0_44 = arith.constant 0 : index
    %102 = vector.load %arg15[%c0_43, %c0_44] : memref<96x32xf32, #tpu.memory_space<vmem>>, vector<96x32xf32>
    %cst_45 = arith.constant dense<0.000000e+00> : vector<2x32xf32>
    %103 = tpu.matmul %101, %102, %cst_45 {dimension_numbers = #tpu.dot_dimension_numbers<[1], [0], [0], [1], [0, 0, 1, 1], [], []>} : vector<2x96xf32>, vector<96x32xf32>, vector<2x32xf32> -> vector<2x32xf32>
    %c0_46 = arith.constant 0 : index
    %c0_47 = arith.constant 0 : index
    %104 = vector.load %arg16[%c0_46, %c0_47] : memref<1x32xf32, #tpu.memory_space<vmem>>, vector<1x32xf32>
    %105 = vector.broadcast %104 : vector<1x32xf32> to vector<2x32xf32>
    %106 = arith.addf %103, %105 : vector<2x32xf32>
    %cst_48 = arith.constant 0.000000e+00 : f32
    %107 = vector.broadcast %cst_48 : f32 to vector<2x32xf32>
    %108 = arith.maximumf %106, %107 : vector<2x32xf32>
    %c0_49 = arith.constant 0 : index
    %c0_50 = arith.constant 0 : index
    %109 = vector.load %arg17[%c0_49, %c0_50] : memref<32x16xf32, #tpu.memory_space<vmem>>, vector<32x16xf32>
    %cst_51 = arith.constant dense<0.000000e+00> : vector<2x16xf32>
    %110 = tpu.matmul %108, %109, %cst_51 {dimension_numbers = #tpu.dot_dimension_numbers<[1], [0], [0], [1], [0, 0, 1, 1], [], []>} : vector<2x32xf32>, vector<32x16xf32>, vector<2x16xf32> -> vector<2x16xf32>
    %c0_52 = arith.constant 0 : index
    %c0_53 = arith.constant 0 : index
    %111 = vector.load %arg18[%c0_52, %c0_53] : memref<1x16xf32, #tpu.memory_space<vmem>>, vector<1x16xf32>
    %112 = vector.broadcast %111 : vector<1x16xf32> to vector<2x16xf32>
    %113 = arith.addf %110, %112 : vector<2x16xf32>
    %cst_54 = arith.constant 0.000000e+00 : f32
    %114 = vector.broadcast %cst_54 : f32 to vector<2x16xf32>
    %115 = arith.maximumf %113, %114 : vector<2x16xf32>
    %c0_55 = arith.constant 0 : index
    %c0_56 = arith.constant 0 : index
    %116 = vector.load %arg19[%c0_55, %c0_56] : memref<16x1xf32, #tpu.memory_space<vmem>>, vector<16x1xf32>
    %cst_57 = arith.constant dense<0.000000e+00> : vector<2x1xf32>
    %117 = tpu.matmul %115, %116, %cst_57 {dimension_numbers = #tpu.dot_dimension_numbers<[1], [0], [0], [1], [0, 0, 1, 1], [], []>} : vector<2x16xf32>, vector<16x1xf32>, vector<2x1xf32> -> vector<2x1xf32>
    %c0_58 = arith.constant 0 : index
    %c0_59 = arith.constant 0 : index
    %118 = vector.load %arg20[%c0_58, %c0_59] : memref<1x1xf32, #tpu.memory_space<vmem>>, vector<1x1xf32>
    %119 = vector.broadcast %118 : vector<1x1xf32> to vector<2x1xf32>
    %120 = arith.addf %117, %119 : vector<2x1xf32>
    %c0_60 = arith.constant 0 : index
    %c0_61 = arith.constant 0 : index
    %121 = vector.load %arg21[%c0_60, %c0_61] : memref<2x1xf32, #tpu.memory_space<vmem>>, vector<2x1xf32>
    tpu.vector_store %arg21[%c0_60, %c0_61], %120 {strides = array<i32>} : memref<2x1xf32, #tpu.memory_space<vmem>>, vector<2x1xf32>,
    return
  }
}

</mosaic_0001>

<llo_original>
// kernel: tpu_custom_call.1
$region0: #{tpu_custom_call.1}
  #allocation0 [shape = 'u32[]', space=smem, size = 0x4, offset = 0x4, fixed_abs, tag = 'smem constant byte address 0x4 - core index']
  #allocation1 [shape = 'u32[144,128]{1,0:T(1,128)}', space=vmem, size = 0x12000, scoped, tag = 'internal scratch']
  #allocation2 [shape = 'f32[1,1]{1,0:T(1,128)S(1)}', space=vmem, size = 0x200, scoped, tag = 'scoped memory for tpu_custom_call.1']
  %s0 = inlined_call_operand.vmem [shape: f32[16,32], index: 0, kind: input, shape index: {}]
  %s1 = inlined_call_operand.vmem [shape: f32[16,16], index: 1, kind: input, shape index: {}]
  %s2 = inlined_call_operand.vmem [shape: f32[16,24], index: 2, kind: input, shape index: {}]
  %s3 = inlined_call_operand.vmem [shape: f32[32,32], index: 3, kind: input, shape index: {}]
  %s4 = inlined_call_operand.vmem [shape: f32[1,32], index: 4, kind: input, shape index: {}]
  %s5 = inlined_call_operand.vmem [shape: f32[16,32], index: 5, kind: input, shape index: {}]
  %s6 = inlined_call_operand.vmem [shape: f32[1,32], index: 6, kind: input, shape index: {}]
  %s7 = inlined_call_operand.vmem [shape: f32[24,32], index: 7, kind: input, shape index: {}]
  %s8 = inlined_call_operand.vmem [shape: f32[1,32], index: 8, kind: input, shape index: {}]
  %s9 = inlined_call_operand.vmem [shape: f32[96,32], index: 9, kind: input, shape index: {}]
  %s10 = inlined_call_operand.vmem [shape: f32[1,32], index: 10, kind: input, shape index: {}]
  %s11 = inlined_call_operand.vmem [shape: f32[128,32], index: 11, kind: input, shape index: {}]
  %s12 = inlined_call_operand.vmem [shape: f32[1,32], index: 12, kind: input, shape index: {}]
  %s13 = inlined_call_operand.vmem [shape: f32[160,32], index: 13, kind: input, shape index: {}]
  %s14 = inlined_call_operand.vmem [shape: f32[1,32], index: 14, kind: input, shape index: {}]
  %s15 = inlined_call_operand.vmem [shape: f32[96,32], index: 15, kind: input, shape index: {}]
  %s16 = inlined_call_operand.vmem [shape: f32[1,32], index: 16, kind: input, shape index: {}]
  %s17 = inlined_call_operand.vmem [shape: f32[32,16], index: 17, kind: input, shape index: {}]
  %s18 = inlined_call_operand.vmem [shape: f32[1,16], index: 18, kind: input, shape index: {}]
  %s19 = inlined_call_operand.vmem [shape: f32[16,1], index: 19, kind: input, shape index: {}]
  %s20 = inlined_call_operand.<no memory space> [shape: f32[1,1], index: 20, kind: input, shape index: {}]
  %s21 = inlined_call_operand.vmem [shape: f32[2,1], index: 21, kind: output, shape index: {}]
  %s22 = sld [smem:[#allocation0]]
  $region94: #{tpu_custom_call.1} parent=0
    _
  %s24 = ssub.s32 1, %s22
  %s25 = scalar_select 0, %s24, %s22
  %v26 = vstv %s20
  %27 = vst [vmem:[#allocation2] sm:$0x1] %v26
  // Predicated region
  $region2: #{tpu_custom_call.1} parent=0 // pred_check
    _
  $region3: #{tpu_custom_call.1} parent=0 // pred_check_branch
    %29 = sbr.rel (0) target = $region5
  $region4: #{tpu_custom_call.1} parent=0 // pred_region
    _
  $region5: #{tpu_custom_call.1} parent=0 // pred_fallthru
    _
  // Predicated region
  $region6: #{tpu_custom_call.1} parent=0 // pred_check
    _
  $region7: #{tpu_custom_call.1} parent=0 // pred_check_branch
    %31 = sbr.rel (0) target = $region9
  $region8: #{tpu_custom_call.1} parent=0 // pred_region
    _
  $region9: #{tpu_custom_call.1} parent=0 // pred_fallthru
    _
  // Predicated region
  $region10: #{tpu_custom_call.1} parent=0 // pred_check
    _
  $region11: #{tpu_custom_call.1} parent=0 // pred_check_branch
    %33 = sbr.rel (0) target = $region13
  $region12: #{tpu_custom_call.1} parent=0 // pred_region
    _
  $region13: #{tpu_custom_call.1} parent=0 // pred_fallthru
    _
  // Predicated region
  $region14: #{tpu_custom_call.1} parent=0 // pred_check
    _
  $region15: #{tpu_custom_call.1} parent=0 // pred_check_branch
    %35 = sbr.rel (0) target = $region17
  $region16: #{tpu_custom_call.1} parent=0 // pred_region
    _
  $region17: #{tpu_custom_call.1} parent=0 // pred_fallthru
    _
  // Predicated region
  $region18: #{tpu_custom_call.1} parent=0 // pred_check
    _
  $region19: #{tpu_custom_call.1} parent=0 // pred_check_branch
    %37 = sbr.rel (0) target = $region21
  $region20: #{tpu_custom_call.1} parent=0 // pred_region
    _
  $region21: #{tpu_custom_call.1} parent=0 // pred_fallthru
    _
  // Predicated region
  $region22: #{tpu_custom_call.1} parent=0 // pred_check
    _
  $region23: #{tpu_custom_call.1} parent=0 // pred_check_branch
    %39 = sbr.rel (0) target = $region25
  $region24: #{tpu_custom_call.1} parent=0 // pred_region
    _
  $region25: #{tpu_custom_call.1} parent=0 // pred_fallthru
    _
  // Predicated region
  $region26: #{tpu_custom_call.1} parent=0 // pred_check
    _
  $region27: #{tpu_custom_call.1} parent=0 // pred_check_branch
    %41 = sbr.rel (0) target = $region29
  $region28: #{tpu_custom_call.1} parent=0 // pred_region
    _
  $region29: #{tpu_custom_call.1} parent=0 // pred_fallthru
    _
  // Predicated region
  $region30: #{tpu_custom_call.1} parent=0 // pred_check
    _
  $region31: #{tpu_custom_call.1} parent=0 // pred_check_branch
    %43 = sbr.rel (0) target = $region33
  $region32: #{tpu_custom_call.1} parent=0 // pred_region
    _
  $region33: #{tpu_custom_call.1} parent=0 // pred_fallthru
    _
  // Predicated region
  $region34: #{tpu_custom_call.1} parent=0 // pred_check
    _
  $region35: #{tpu_custom_call.1} parent=0 // pred_check_branch
    %45 = sbr.rel (0) target = $region37
  $region36: #{tpu_custom_call.1} parent=0 // pred_region
    _
  $region37: #{tpu_custom_call.1} parent=0 // pred_fallthru
    _
  // Predicated region
  $region38: #{tpu_custom_call.1} parent=0 // pred_check
    _
  $region39: #{tpu_custom_call.1} parent=0 // pred_check_branch
    %47 = sbr.rel (0) target = $region41
  $region40: #{tpu_custom_call.1} parent=0 // pred_region
    _
  $region41: #{tpu_custom_call.1} parent=0 // pred_fallthru
    _
  // Predicated region
  $region42: #{tpu_custom_call.1} parent=0 // pred_check
    _
  $region43: #{tpu_custom_call.1} parent=0 // pred_check_branch
    %49 = sbr.rel (0) target = $region45
  $region44: #{tpu_custom_call.1} parent=0 // pred_region
    _
  $region45: #{tpu_custom_call.1} parent=0 // pred_fallthru
    _
  // Predicated region
  $region46: #{tpu_custom_call.1} parent=0 // pred_check
    _
  $region47: #{tpu_custom_call.1} parent=0 // pred_check_branch
    %51 = sbr.rel (0) target = $region49
  $region48: #{tpu_custom_call.1} parent=0 // pred_region
    _
  $region49: #{tpu_custom_call.1} parent=0 // pred_fallthru
    _
  // Predicated region
  $region50: #{tpu_custom_call.1} parent=0 // pred_check
    _
  $region51: #{tpu_custom_call.1} parent=0 // pred_check_branch
    %53 = sbr.rel (0) target = $region53
  $region52: #{tpu_custom_call.1} parent=0 // pred_region
    _
  $region53: #{tpu_custom_call.1} parent=0 // pred_fallthru
    _
  // Predicated region
  $region54: #{tpu_custom_call.1} parent=0 // pred_check
    _
  $region55: #{tpu_custom_call.1} parent=0 // pred_check_branch
    %55 = sbr.rel (0) target = $region57
  $region56: #{tpu_custom_call.1} parent=0 // pred_region
    _
  $region57: #{tpu_custom_call.1} parent=0 // pred_fallthru
    _
  // Predicated region
  $region58: #{tpu_custom_call.1} parent=0 // pred_check
    _
  $region59: #{tpu_custom_call.1} parent=0 // pred_check_branch
    %57 = sbr.rel (0) target = $region61
  $region60: #{tpu_custom_call.1} parent=0 // pred_region
    _
  $region61: #{tpu_custom_call.1} parent=0 // pred_fallthru
    _
  // Predicated region
  $region62: #{tpu_custom_call.1} parent=0 // pred_check
    _
  $region63: #{tpu_custom_call.1} parent=0 // pred_check_branch
    %59 = sbr.rel (0) target = $region65
  $region64: #{tpu_custom_call.1} parent=0 // pred_region
    _
  $region65: #{tpu_custom_call.1} parent=0 // pred_fallthru
    _
  // Predicated region
  $region66: #{tpu_custom_call.1} parent=0 // pred_check
    _
  $region67: #{tpu_custom_call.1} parent=0 // pred_check_branch
    %61 = sbr.rel (0) target = $region69
  $region68: #{tpu_custom_call.1} parent=0 // pred_region
    _
  $region69: #{tpu_custom_call.1} parent=0 // pred_fallthru
    _
  // Predicated region
  $region70: #{tpu_custom_call.1} parent=0 // pred_check
    _
  $region71: #{tpu_custom_call.1} parent=0 // pred_check_branch
    %63 = sbr.rel (0) target = $region73
  $region72: #{tpu_custom_call.1} parent=0 // pred_region
    _
  $region73: #{tpu_custom_call.1} parent=0 // pred_fallthru
    _
  // Predicated region
  $region74: #{tpu_custom_call.1} parent=0 // pred_check
    _
  $region75: #{tpu_custom_call.1} parent=0 // pred_check_branch
    %65 = sbr.rel (0) target = $region77
  $region76: #{tpu_custom_call.1} parent=0 // pred_region
    _
  $region77: #{tpu_custom_call.1} parent=0 // pred_fallthru
    _
  // Predicated region
  $region78: #{tpu_custom_call.1} parent=0 // pred_check
    _
  $region79: #{tpu_custom_call.1} parent=0 // pred_check_branch
    %67 = sbr.rel (0) target = $region81
  $region80: #{tpu_custom_call.1} parent=0 // pred_region
    _
  $region81: #{tpu_custom_call.1} parent=0 // pred_fallthru
    _
  // Predicated region
  $region82: #{tpu_custom_call.1} parent=0 // pred_check
    _
  $region83: #{tpu_custom_call.1} parent=0 // pred_check_branch
    %69 = sbr.rel (0) target = $region85
  $region84: #{tpu_custom_call.1} parent=0 // pred_region
    _
  $region85: #{tpu_custom_call.1} parent=0 // pred_fallthru
    _
  %v70 = vld [vmem:[%s0] sm:$0xff]
  %v71 = vld [vmem:[%s0 + $0x8] sm:$0xff]
  %v72 = vld [vmem:[%s3] sm:$0xff]
  %v73 = vld [vmem:[%s3 + $0x8] sm:$0xff]
  %v74 = vld [vmem:[%s3 + $0x10] sm:$0xff]
  %v75 = vld [vmem:[%s3 + $0x18] sm:$0xff]
  %v76 = vld [vmem:[%s4] sm:$0x1]
  %v78 = vlaneseq
  %v79 = vshrl.u32 %v78, 7
  %v80 = vsub.s32 0, %v79
  %v81 = vrot.slane %v76, %v80
  %vm83 = vcmask 261120
  %v85 = vsel %vm83, %v70, 0
  %v88 = vsel %vm83, %v71, 0
  %90 = vmatprep.subr.mxu0 0.0
  %91 = vmatpush1.msra.mxu0 %v72
  %92 = vmatprep.subr.mxu0 0.0
  %93 = vmatpush1.msra.mxu0 %v73
  %94 = vmatprep.subr.mxu0 0.0
  %95 = vmatpush1.msra.mxu0 %v74
  %96 = vmatprep.subr.mxu0 0.0
  %97 = vmatpush1.msra.mxu0 %v75
  %98 = vmatprep.subr.mxu0 0.0
  %99 = vmatpush1.msra.mxu0 0.0
  %100 = vmatprep.subr.mxu0 0.0
  %101 = vmatpush1.msra.mxu0 0.0
  %102 = vmatprep.subr.mxu0 0.0
  %103 = vmatpush1.msra.mxu0 0.0
  %104 = vmatprep.subr.mxu0 0.0
  %105 = vmatpush1.msra.mxu0 0.0
  %106 = vmatprep.subr.mxu0 0.0
  %107 = vmatpush1.msra.mxu0 0.0
  %108 = vmatprep.subr.mxu0 0.0
  %109 = vmatpush1.msra.mxu0 0.0
  %110 = vmatprep.subr.mxu0 0.0
  %111 = vmatpush1.msra.mxu0 0.0
  %112 = vmatprep.subr.mxu0 0.0
  %113 = vmatpush1.msra.mxu0 0.0
  %114 = vmatprep.subr.mxu0 0.0
  %115 = vmatpush1.msra.mxu0 0.0
  %116 = vmatprep.subr.mxu0 0.0
  %117 = vmatpush1.msra.mxu0 0.0
  %118 = vmatprep.subr.mxu0 0.0
  %119 = vmatpush1.msra.mxu0 0.0
  %120 = vmatprep.subr.mxu0 0.0
  %121 = vmatpush1.msra.mxu0 0.0
  %122 = vmatprep.subr.mxu0 0.0
  %123 = vmatpush1.msra.mxu0 0.0
  %124 = vmatprep.subr.mxu0 0.0
  %125 = vmatpush1.msra.mxu0 0.0
  %126 = vmatprep.subr.mxu0 0.0
  %127 = vmatpush1.msra.mxu0 0.0
  %128 = vmatprep.subr.mxu0 0.0
  %129 = vmatpush1.msra.mxu0 0.0
  %130 = vmatprep.subr.mxu0 0.0
  %131 = vmatpush1.msra.mxu0 0.0
  %132 = vmatprep.subr.mxu0 0.0
  %133 = vmatpush1.msra.mxu0 0.0
  %134 = vmatprep.subr.mxu0 0.0
  %135 = vmatpush1.msra.mxu0 0.0
  %136 = vmatprep.subr.mxu0 0.0
  %137 = vmatpush1.msra.mxu0 0.0
  %138 = vmatprep.subr.mxu0 0.0
  %139 = vmatpush1.msra.mxu0 0.0
  %140 = vmatprep.subr.mxu0 0.0
  %141 = vmatpush1.msra.mxu0 0.0
  %142 = vmatprep.subr.mxu0 0.0
  %143 = vmatpush1.msra.mxu0 0.0
  %144 = vmatprep.subr.mxu0 0.0
  %145 = vmatpush1.msra.mxu0 0.0
  %146 = vmatprep.subr.mxu0 0.0
  %147 = vmatpush1.msra.mxu0 0.0
  %148 = vmatprep.subr.mxu0 0.0
  %149 = vmatpush1.msra.mxu0 0.0
  %150 = vmatprep.subr.mxu0 0.0
  %151 = vmatpush1.msra.mxu0 0.0
  %152 = vmatprep.subr.mxu0 0.0
  %153 = vmatpush1.msra.mxu0 0.0
  %154 = vmatprep.mubr.f32.mxu0 0.0
  %155 = vmatmul.mubr.f32.gmra.mrb[0].mxu0 %v85
  %v156 = vpop.f32.mrb[0].mxu0
  %v157 = vadd.f32 %v81, %v156
  %v158 = vpop.f32.mrb[0].mxu0
  %159 = vmatprep.mubr.f32.mxu0 0.0
  %160 = vmatmul.mubr.f32.gmra.mrb[0].mxu0 %v88
  %v161 = vpop.f32.mrb[0].mxu0
  %v162 = vadd.f32 %v81, %v161
  %v163 = vpop.f32.mrb[0].mxu0
  %164 = vdwg.mxu0
  %v165 = vld [vmem:[%s1] sm:$0xff]
  %v166 = vld [vmem:[%s1 + $0x8] sm:$0xff]
  %v167 = vld [vmem:[%s5] sm:$0xff]
  %v168 = vld [vmem:[%s5 + $0x8] sm:$0xff]
  %v169 = vld [vmem:[%s6] sm:$0x1]
  %v171 = vlaneseq
  %v172 = vshrl.u32 %v171, 7
  %v173 = vsub.s32 0, %v172
  %v174 = vrot.slane %v169, %v173
  %vm176 = vcmask 130048
  %v178 = vsel %vm176, %v165, 0
  %v181 = vsel %vm176, %v166, 0
  %183 = vmatprep.subr.mxu0 0.0
  %184 = vmatpush1.msra.mxu0 %v167
  %185 = vmatprep.subr.mxu0 0.0
  %186 = vmatpush1.msra.mxu0 %v168
  %187 = vmatprep.subr.mxu0 0.0
  %188 = vmatpush1.msra.mxu0 0.0
  %189 = vmatprep.subr.mxu0 0.0
  %190 = vmatpush1.msra.mxu0 0.0
  %191 = vmatprep.subr.mxu0 0.0
  %192 = vmatpush1.msra.mxu0 0.0
  %193 = vmatprep.subr.mxu0 0.0
  %194 = vmatpush1.msra.mxu0 0.0
  %195 = vmatprep.subr.mxu0 0.0
  %196 = vmatpush1.msra.mxu0 0.0
  %197 = vmatprep.subr.mxu0 0.0
  %198 = vmatpush1.msra.mxu0 0.0
  %199 = vmatprep.subr.mxu0 0.0
  %200 = vmatpush1.msra.mxu0 0.0
  %201 = vmatprep.subr.mxu0 0.0
  %202 = vmatpush1.msra.mxu0 0.0
  %203 = vmatprep.subr.mxu0 0.0
  %204 = vmatpush1.msra.mxu0 0.0
  %205 = vmatprep.subr.mxu0 0.0
  %206 = vmatpush1.msra.mxu0 0.0
  %207 = vmatprep.subr.mxu0 0.0
  %208 = vmatpush1.msra.mxu0 0.0
  %209 = vmatprep.subr.mxu0 0.0
  %210 = vmatpush1.msra.mxu0 0.0
  %211 = vmatprep.subr.mxu0 0.0
  %212 = vmatpush1.msra.mxu0 0.0
  %213 = vmatprep.subr.mxu0 0.0
  %214 = vmatpush1.msra.mxu0 0.0
  %215 = vmatprep.subr.mxu0 0.0
  %216 = vmatpush1.msra.mxu0 0.0
  %217 = vmatprep.subr.mxu0 0.0
  %218 = vmatpush1.msra.mxu0 0.0
  %219 = vmatprep.subr.mxu0 0.0
  %220 = vmatpush1.msra.mxu0 0.0
  %221 = vmatprep.subr.mxu0 0.0
  %222 = vmatpush1.msra.mxu0 0.0
  %223 = vmatprep.subr.mxu0 0.0
  %224 = vmatpush1.msra.mxu0 0.0
  %225 = vmatprep.subr.mxu0 0.0
  %226 = vmatpush1.msra.mxu0 0.0
  %227 = vmatprep.subr.mxu0 0.0
  %228 = vmatpush1.msra.mxu0 0.0
  %229 = vmatprep.subr.mxu0 0.0
  %230 = vmatpush1.msra.mxu0 0.0
  %231 = vmatprep.subr.mxu0 0.0
  %232 = vmatpush1.msra.mxu0 0.0
  %233 = vmatprep.subr.mxu0 0.0
  %234 = vmatpush1.msra.mxu0 0.0
  %235 = vmatprep.subr.mxu0 0.0
  %236 = vmatpush1.msra.mxu0 0.0
  %237 = vmatprep.subr.mxu0 0.0
  %238 = vmatpush1.msra.mxu0 0.0
  %239 = vmatprep.subr.mxu0 0.0
  %240 = vmatpush1.msra.mxu0 0.0
  %241 = vmatprep.subr.mxu0 0.0
  %242 = vmatpush1.msra.mxu0 0.0
  %243 = vmatprep.subr.mxu0 0.0
  %244 = vmatpush1.msra.mxu0 0.0
  %245 = vmatprep.subr.mxu0 0.0
  %246 = vmatpush1.msra.mxu0 0.0
  %247 = vmatprep.mubr.f32.mxu0 0.0
  %248 = vmatmul.mubr.f32.gmra.mrb[0].mxu0 %v178
  %v249 = vpop.f32.mrb[0].mxu0
  %v250 = vadd.f32 %v174, %v249
  %v251 = vpop.f32.mrb[0].mxu0
  %252 = vmatprep.mubr.f32.mxu0 0.0
  %253 = vmatmul.mubr.f32.gmra.mrb[0].mxu0 %v181
  %v254 = vpop.f32.mrb[0].mxu0
  %v255 = vadd.f32 %v174, %v254
  %v256 = vpop.f32.mrb[0].mxu0
  %257 = vdwg.mxu0
  %v258 = vld [vmem:[%s2] sm:$0xff]
  %v259 = vld [vmem:[%s2 + $0x8] sm:$0xff]
  %v260 = vld [vmem:[%s7] sm:$0xff]
  %v261 = vld [vmem:[%s7 + $0x8] sm:$0xff]
  %v262 = vld [vmem:[%s7 + $0x10] sm:$0xff]
  %v263 = vld [vmem:[%s8] sm:$0x1]
  %v265 = vlaneseq
  %v266 = vshrl.u32 %v265, 7
  %v267 = vsub.s32 0, %v266
  %v268 = vrot.slane %v263, %v267
  %vm270 = vcmask 195584
  %v272 = vsel %vm270, %v258, 0
  %v275 = vsel %vm270, %v259, 0
  %277 = vmatprep.subr.mxu0 0.0
  %278 = vmatpush1.msra.mxu0 %v260
  %279 = vmatprep.subr.mxu0 0.0
  %280 = vmatpush1.msra.mxu0 %v261
  %281 = vmatprep.subr.mxu0 0.0
  %282 = vmatpush1.msra.mxu0 %v262
  %283 = vmatprep.subr.mxu0 0.0
  %284 = vmatpush1.msra.mxu0 0.0
  %285 = vmatprep.subr.mxu0 0.0
  %286 = vmatpush1.msra.mxu0 0.0
  %287 = vmatprep.subr.mxu0 0.0
  %288 = vmatpush1.msra.mxu0 0.0
  %289 = vmatprep.subr.mxu0 0.0
  %290 = vmatpush1.msra.mxu0 0.0
  %291 = vmatprep.subr.mxu0 0.0
  %292 = vmatpush1.msra.mxu0 0.0
  %293 = vmatprep.subr.mxu0 0.0
  %294 = vmatpush1.msra.mxu0 0.0
  %295 = vmatprep.subr.mxu0 0.0
  %296 = vmatpush1.msra.mxu0 0.0
  %297 = vmatprep.subr.mxu0 0.0
  %298 = vmatpush1.msra.mxu0 0.0
  %299 = vmatprep.subr.mxu0 0.0
  %300 = vmatpush1.msra.mxu0 0.0
  %301 = vmatprep.subr.mxu0 0.0
  %302 = vmatpush1.msra.mxu0 0.0
  %303 = vmatprep.subr.mxu0 0.0
  %304 = vmatpush1.msra.mxu0 0.0
  %305 = vmatprep.subr.mxu0 0.0
  %306 = vmatpush1.msra.mxu0 0.0
  %307 = vmatprep.subr.mxu0 0.0
  %308 = vmatpush1.msra.mxu0 0.0
  %309 = vmatprep.subr.mxu0 0.0
  %310 = vmatpush1.msra.mxu0 0.0
  %311 = vmatprep.subr.mxu0 0.0
  %312 = vmatpush1.msra.mxu0 0.0
  %313 = vmatprep.subr.mxu0 0.0
  %314 = vmatpush1.msra.mxu0 0.0
  %315 = vmatprep.subr.mxu0 0.0
  %316 = vmatpush1.msra.mxu0 0.0
  %317 = vmatprep.subr.mxu0 0.0
  %318 = vmatpush1.msra.mxu0 0.0
  %319 = vmatprep.subr.mxu0 0.0
  %320 = vmatpush1.msra.mxu0 0.0
  %321 = vmatprep.subr.mxu0 0.0
  %322 = vmatpush1.msra.mxu0 0.0
  %323 = vmatprep.subr.mxu0 0.0
  %324 = vmatpush1.msra.mxu0 0.0
  %325 = vmatprep.subr.mxu0 0.0
  %326 = vmatpush1.msra.mxu0 0.0
  %327 = vmatprep.subr.mxu0 0.0
  %328 = vmatpush1.msra.mxu0 0.0
  %329 = vmatprep.subr.mxu0 0.0
  %330 = vmatpush1.msra.mxu0 0.0
  %331 = vmatprep.subr.mxu0 0.0
  %332 = vmatpush1.msra.mxu0 0.0
  %333 = vmatprep.subr.mxu0 0.0
  %334 = vmatpush1.msra.mxu0 0.0
  %335 = vmatprep.subr.mxu0 0.0
  %336 = vmatpush1.msra.mxu0 0.0
  %337 = vmatprep.subr.mxu0 0.0
  %338 = vmatpush1.msra.mxu0 0.0
  %339 = vmatprep.subr.mxu0 0.0
  %340 = vmatpush1.msra.mxu0 0.0
  %341 = vmatprep.mubr.f32.mxu0 0.0
  %342 = vmatmul.mubr.f32.gmra.mrb[0].mxu0 %v272
  %v343 = vpop.f32.mrb[0].mxu0
  %v344 = vadd.f32 %v268, %v343
  %v345 = vpop.f32.mrb[0].mxu0
  %346 = vmatprep.mubr.f32.mxu0 0.0
  %347 = vmatmul.mubr.f32.gmra.mrb[0].mxu0 %v275
  %v348 = vpop.f32.mrb[0].mxu0
  %v349 = vadd.f32 %v268, %v348
  %v350 = vpop.f32.mrb[0].mxu0
  %351 = vdwg.mxu0
  %vm355 = vcmask 1046528
  %v356 = vrot.slane %v157, 1
  %v357 = vrot.slane %v250, 1
  %v358 = vsel %vm355, %v356, %v357
  %v359 = vrot.slane %v344, 1
  %v360 = vsel %vm355, %v357, %v359
  %361 = vrot.lane.b32.xlu0 %v358, 32
  %v362 = vpop.permute.xlu0 %361
  %363 = vrot.lane.b32.xlu0 %v360, 32
  %v364 = vpop.permute.xlu0 %363
  %365 = vrot.lane.b32.xlu0 %v359, 32
  %v366 = vpop.permute.xlu0 %365
  %vm370 = vcmask 1045504
  %v371 = vrot.slane %v157, 2
  %v372 = vrot.slane %v250, 2
  %v373 = vsel %vm370, %v371, %v372
  %v374 = vrot.slane %v344, 2
  %v375 = vsel %vm370, %v372, %v374
  %376 = vrot.lane.b32.xlu0 %v373, 64
  %v377 = vpop.permute.xlu0 %376
  %378 = vrot.lane.b32.xlu0 %v375, 64
  %v379 = vpop.permute.xlu0 %378
  %380 = vrot.lane.b32.xlu0 %v374, 64
  %v381 = vpop.permute.xlu0 %380
  %v385 = vsel %vm83, %v157, %v362
  %v386 = vsel %vm83, %v250, %v364
  %v387 = vsel %vm83, %v344, %v366
  %vm388 = vcmask 523264
  %v389 = vsel %vm388, %v385, %v377
  %v390 = vsel %vm388, %v386, %v379
  %v391 = vsel %vm388, %v387, %v381
  %v395 = vrot.slane %v162, 1
  %v396 = vrot.slane %v255, 1
  %v397 = vsel %vm355, %v395, %v396
  %v398 = vrot.slane %v349, 1
  %v399 = vsel %vm355, %v396, %v398
  %400 = vrot.lane.b32.xlu0 %v397, 32
  %v401 = vpop.permute.xlu0 %400
  %402 = vrot.lane.b32.xlu0 %v399, 32
  %v403 = vpop.permute.xlu0 %402
  %404 = vrot.lane.b32.xlu0 %v398, 32
  %v405 = vpop.permute.xlu0 %404
  %v409 = vrot.slane %v162, 2
  %v410 = vrot.slane %v255, 2
  %v411 = vsel %vm370, %v409, %v410
  %v412 = vrot.slane %v349, 2
  %v413 = vsel %vm370, %v410, %v412
  %414 = vrot.lane.b32.xlu0 %v411, 64
  %v415 = vpop.permute.xlu0 %414
  %416 = vrot.lane.b32.xlu0 %v413, 64
  %v417 = vpop.permute.xlu0 %416
  %418 = vrot.lane.b32.xlu0 %v412, 64
  %v419 = vpop.permute.xlu0 %418
  %v423 = vsel %vm83, %v162, %v401
  %v424 = vsel %vm83, %v255, %v403
  %v425 = vsel %vm83, %v349, %v405
  %v426 = vsel %vm388, %v423, %v415
  %v427 = vsel %vm388, %v424, %v417
  %v428 = vsel %vm388, %v425, %v419
  %v432 = vrot.slane %v426, 2
  %v433 = vrot.slane %v427, 2
  %v434 = vsel %vm370, %v432, %v433
  %v435 = vrot.slane %v428, 2
  %v436 = vsel %vm370, %v433, %v435
  %v438 = vsel %vm370, %v391, %v432
  %v439 = vld [vmem:[%s9] sm:$0xff]
  %v440 = vld [vmem:[%s9 + $0x8] sm:$0xff]
  %v441 = vld [vmem:[%s9 + $0x10] sm:$0xff]
  %v442 = vld [vmem:[%s9 + $0x18] sm:$0xff]
  %v443 = vld [vmem:[%s9 + $0x20] sm:$0xff]
  %v444 = vld [vmem:[%s9 + $0x28] sm:$0xff]
  %v445 = vld [vmem:[%s9 + $0x30] sm:$0xff]
  %v446 = vld [vmem:[%s9 + $0x38] sm:$0xff]
  %v447 = vld [vmem:[%s9 + $0x40] sm:$0xff]
  %v448 = vld [vmem:[%s9 + $0x48] sm:$0xff]
  %v449 = vld [vmem:[%s9 + $0x50] sm:$0xff]
  %v450 = vld [vmem:[%s9 + $0x58] sm:$0xff]
  %v451 = vld [vmem:[%s10] sm:$0x1]
  %v453 = vlaneseq
  %v454 = vshrl.u32 %v453, 7
  %v455 = vsub.s32 0, %v454
  %v456 = vrot.slane %v451, %v455
  %vm458 = vcmask 785408
  %v460 = vsel %vm458, %v389, 0
  %v463 = vsel %vm458, %v390, 0
  %v466 = vsel %vm458, %v438, 0
  %v468 = vsel %vm458, %v434, 0
  %v470 = vsel %vm458, %v436, 0
  %v472 = vsel %vm458, %v435, 0
  %474 = vmatprep.subr.mxu0 0.0
  %475 = vmatpush1.msra.mxu0 %v439
  %476 = vmatprep.subr.mxu0 0.0
  %477 = vmatpush1.msra.mxu0 %v440
  %478 = vmatprep.subr.mxu0 0.0
  %479 = vmatpush1.msra.mxu0 %v441
  %480 = vmatprep.subr.mxu0 0.0
  %481 = vmatpush1.msra.mxu0 %v442
  %482 = vmatprep.subr.mxu0 0.0
  %483 = vmatpush1.msra.mxu0 %v443
  %484 = vmatprep.subr.mxu0 0.0
  %485 = vmatpush1.msra.mxu0 %v444
  %486 = vmatprep.subr.mxu0 0.0
  %487 = vmatpush1.msra.mxu0 %v445
  %488 = vmatprep.subr.mxu0 0.0
  %489 = vmatpush1.msra.mxu0 %v446
  %490 = vmatprep.subr.mxu0 0.0
  %491 = vmatpush1.msra.mxu0 %v447
  %492 = vmatprep.subr.mxu0 0.0
  %493 = vmatpush1.msra.mxu0 %v448
  %494 = vmatprep.subr.mxu0 0.0
  %495 = vmatpush1.msra.mxu0 %v449
  %496 = vmatprep.subr.mxu0 0.0
  %497 = vmatpush1.msra.mxu0 %v450
  %498 = vmatprep.subr.mxu0 0.0
  %499 = vmatpush1.msra.mxu0 0.0
  %500 = vmatprep.subr.mxu0 0.0
  %501 = vmatpush1.msra.mxu0 0.0
  %502 = vmatprep.subr.mxu0 0.0
  %503 = vmatpush1.msra.mxu0 0.0
  %504 = vmatprep.subr.mxu0 0.0
  %505 = vmatpush1.msra.mxu0 0.0
  %506 = vmatprep.subr.mxu0 0.0
  %507 = vmatpush1.msra.mxu0 0.0
  %508 = vmatprep.subr.mxu0 0.0
  %509 = vmatpush1.msra.mxu0 0.0
  %510 = vmatprep.subr.mxu0 0.0
  %511 = vmatpush1.msra.mxu0 0.0
  %512 = vmatprep.subr.mxu0 0.0
  %513 = vmatpush1.msra.mxu0 0.0
  %514 = vmatprep.subr.mxu0 0.0
  %515 = vmatpush1.msra.mxu0 0.0
  %516 = vmatprep.subr.mxu0 0.0
  %517 = vmatpush1.msra.mxu0 0.0
  %518 = vmatprep.subr.mxu0 0.0
  %519 = vmatpush1.msra.mxu0 0.0
  %520 = vmatprep.subr.mxu0 0.0
  %521 = vmatpush1.msra.mxu0 0.0
  %522 = vmatprep.subr.mxu0 0.0
  %523 = vmatpush1.msra.mxu0 0.0
  %524 = vmatprep.subr.mxu0 0.0
  %525 = vmatpush1.msra.mxu0 0.0
  %526 = vmatprep.subr.mxu0 0.0
  %527 = vmatpush1.msra.mxu0 0.0
  %528 = vmatprep.subr.mxu0 0.0
  %529 = vmatpush1.msra.mxu0 0.0
  %530 = vmatprep.subr.mxu0 0.0
  %531 = vmatpush1.msra.mxu0 0.0
  %532 = vmatprep.subr.mxu0 0.0
  %533 = vmatpush1.msra.mxu0 0.0
  %534 = vmatprep.subr.mxu0 0.0
  %535 = vmatpush1.msra.mxu0 0.0
  %536 = vmatprep.subr.mxu0 0.0
  %537 = vmatpush1.msra.mxu0 0.0
  %538 = vmatprep.mubr.f32.mxu0 0.0
  %539 = vmatmul.mubr.f32.gmra.mrb[0].mxu0 %v460
  %v540 = vpop.f32.mrb[0].mxu0
  %v541 = vadd.f32 %v456, %v540
  %v542 = vpop.f32.mrb[0].mxu0
  %543 = vmatprep.mubr.f32.mxu0 0.0
  %544 = vmatmul.mubr.f32.gmra.mrb[0].mxu0 %v463
  %v545 = vpop.f32.mrb[0].mxu0
  %v546 = vadd.f32 %v456, %v545
  %v547 = vpop.f32.mrb[0].mxu0
  %548 = vmatprep.mubr.f32.mxu0 0.0
  %549 = vmatmul.mubr.f32.gmra.mrb[0].mxu0 %v466
  %v550 = vpop.f32.mrb[0].mxu0
  %v551 = vadd.f32 %v456, %v550
  %v552 = vpop.f32.mrb[0].mxu0
  %553 = vmatprep.mubr.f32.mxu0 0.0
  %554 = vmatmul.mubr.f32.gmra.mrb[0].mxu0 %v468
  %v555 = vpop.f32.mrb[0].mxu0
  %v556 = vadd.f32 %v456, %v555
  %v557 = vpop.f32.mrb[0].mxu0
  %558 = vmatprep.mubr.f32.mxu0 0.0
  %559 = vmatmul.mubr.f32.gmra.mrb[0].mxu0 %v470
  %v560 = vpop.f32.mrb[0].mxu0
  %v561 = vadd.f32 %v456, %v560
  %v562 = vpop.f32.mrb[0].mxu0
  %563 = vmatprep.mubr.f32.mxu0 0.0
  %564 = vmatmul.mubr.f32.gmra.mrb[0].mxu0 %v472
  %v565 = vpop.f32.mrb[0].mxu0
  %v566 = vadd.f32 %v456, %v565
  %v567 = vpop.f32.mrb[0].mxu0
  %568 = vdwg.mxu0
  %v569 = vmax.f32 %v541, 0.0
  %v570 = vmax.f32 %v546, 0.0
  %v571 = vmax.f32 %v551, 0.0
  %v572 = vmax.f32 %v556, 0.0
  %v573 = vmax.f32 %v561, 0.0
  %v574 = vmax.f32 %v566, 0.0
  %v575 = vsel %vm83, %v569, -inf
  %v576 = vsel %vm83, %v570, -inf
  %vm577 = vcmask 259072
  %v578 = vsel %vm577, %v571, -inf
  %v579 = vmax.f32 %v575, %v576
  %v580 = vmax.f32 %v579, %v578
  %v581 = vrot.slane %v580, 4
  %v582 = vmax.f32 %v580, %v581
  %v583 = vrot.slane %v582, 2
  %v584 = vmax.f32 %v582, %v583
  %v585 = vrot.slane %v584, 1
  %v586 = vmax.f32 %v584, %v585
  %vm587 = vcmask 261126
  %v588 = vsel %vm587, %v571, -inf
  %v589 = vsel %vm83, %v572, -inf
  %v590 = vsel %vm83, %v573, -inf
  %vm591 = vcmask 257024
  %v592 = vsel %vm591, %v574, -inf
  %v593 = vmax.f32 %v588, %v589
  %v594 = vmax.f32 %v590, %v592
  %v595 = vmax.f32 %v593, %v594
  %v596 = vrot.slane %v595, 4
  %v597 = vmax.f32 %v595, %v596
  %v598 = vrot.slane %v597, 2
  %v599 = vmax.f32 %v597, %v598
  %v600 = vrot.slane %v599, 1
  %v601 = vmax.f32 %v599, %v600
  %vm602 = vcmask 1040384
  %v603 = vsel %vm602, %v586, %v601
  %vm604 = vcmask 1044480
  %v605 = vrot.slane %v157, 3
  %v606 = vrot.slane %v250, 3
  %v607 = vsel %vm604, %v605, %v606
  %v608 = vrot.slane %v344, 3
  %v609 = vsel %vm604, %v606, %v608
  %610 = vrot.lane.b32.xlu0 %v607, 96
  %v611 = vpop.permute.xlu0 %610
  %612 = vrot.lane.b32.xlu0 %v609, 96
  %v613 = vpop.permute.xlu0 %612
  %614 = vrot.lane.b32.xlu0 %v608, 96
  %v615 = vpop.permute.xlu0 %614
  %v619 = vsel %vm458, %v389, %v611
  %v620 = vsel %vm458, %v390, %v613
  %v621 = vsel %vm458, %v391, %v615
  %v622 = vrot.slane %v162, 3
  %v623 = vrot.slane %v255, 3
  %v624 = vsel %vm604, %v622, %v623
  %v625 = vrot.slane %v349, 3
  %v626 = vsel %vm604, %v623, %v625
  %627 = vrot.lane.b32.xlu0 %v624, 96
  %v628 = vpop.permute.xlu0 %627
  %629 = vrot.lane.b32.xlu0 %v626, 96
  %v630 = vpop.permute.xlu0 %629
  %631 = vrot.lane.b32.xlu0 %v625, 96
  %v632 = vpop.permute.xlu0 %631
  %v636 = vsel %vm458, %v426, %v628
  %v637 = vsel %vm458, %v427, %v630
  %v638 = vsel %vm458, %v428, %v632
  %v642 = vrot.slane %v636, 3
  %v643 = vrot.slane %v637, 3
  %v644 = vsel %vm604, %v642, %v643
  %v645 = vrot.slane %v638, 3
  %v646 = vsel %vm604, %v643, %v645
  %v651 = vsel %vm604, %v621, %v642
  %v652 = vld [vmem:[%s11] sm:$0xff]
  %v653 = vld [vmem:[%s11 + $0x8] sm:$0xff]
  %v654 = vld [vmem:[%s11 + $0x10] sm:$0xff]
  %v655 = vld [vmem:[%s11 + $0x18] sm:$0xff]
  %v656 = vld [vmem:[%s11 + $0x20] sm:$0xff]
  %v657 = vld [vmem:[%s11 + $0x28] sm:$0xff]
  %v658 = vld [vmem:[%s11 + $0x30] sm:$0xff]
  %v659 = vld [vmem:[%s11 + $0x38] sm:$0xff]
  %v660 = vld [vmem:[%s11 + $0x40] sm:$0xff]
  %v661 = vld [vmem:[%s11 + $0x48] sm:$0xff]
  %v662 = vld [vmem:[%s11 + $0x50] sm:$0xff]
  %v663 = vld [vmem:[%s11 + $0x58] sm:$0xff]
  %v664 = vld [vmem:[%s11 + $0x60] sm:$0xff]
  %v665 = vld [vmem:[%s11 + $0x68] sm:$0xff]
  %v666 = vld [vmem:[%s11 + $0x70] sm:$0xff]
  %v667 = vld [vmem:[%s11 + $0x78] sm:$0xff]
  %v668 = vld [vmem:[%s12] sm:$0x1]
  %v670 = vlaneseq
  %v671 = vshrl.u32 %v670, 7
  %v672 = vsub.s32 0, %v671
  %v673 = vrot.slane %v668, %v672
  %675 = vmatprep.subr.mxu0 0.0
  %676 = vmatpush1.msra.mxu0 %v652
  %677 = vmatprep.subr.mxu0 0.0
  %678 = vmatpush1.msra.mxu0 %v653
  %679 = vmatprep.subr.mxu0 0.0
  %680 = vmatpush1.msra.mxu0 %v654
  %681 = vmatprep.subr.mxu0 0.0
  %682 = vmatpush1.msra.mxu0 %v655
  %683 = vmatprep.subr.mxu0 0.0
  %684 = vmatpush1.msra.mxu0 %v656
  %685 = vmatprep.subr.mxu0 0.0
  %686 = vmatpush1.msra.mxu0 %v657
  %687 = vmatprep.subr.mxu0 0.0
  %688 = vmatpush1.msra.mxu0 %v658
  %689 = vmatprep.subr.mxu0 0.0
  %690 = vmatpush1.msra.mxu0 %v659
  %691 = vmatprep.subr.mxu0 0.0
  %692 = vmatpush1.msra.mxu0 %v660
  %693 = vmatprep.subr.mxu0 0.0
  %694 = vmatpush1.msra.mxu0 %v661
  %695 = vmatprep.subr.mxu0 0.0
  %696 = vmatpush1.msra.mxu0 %v662
  %697 = vmatprep.subr.mxu0 0.0
  %698 = vmatpush1.msra.mxu0 %v663
  %699 = vmatprep.subr.mxu0 0.0
  %700 = vmatpush1.msra.mxu0 %v664
  %701 = vmatprep.subr.mxu0 0.0
  %702 = vmatpush1.msra.mxu0 %v665
  %703 = vmatprep.subr.mxu0 0.0
  %704 = vmatpush1.msra.mxu0 %v666
  %705 = vmatprep.subr.mxu0 0.0
  %706 = vmatpush1.msra.mxu0 %v667
  %707 = vmatprep.subr.mxu0 0.0
  %708 = vmatpush1.msra.mxu0 0.0
  %709 = vmatprep.subr.mxu0 0.0
  %710 = vmatpush1.msra.mxu0 0.0
  %711 = vmatprep.subr.mxu0 0.0
  %712 = vmatpush1.msra.mxu0 0.0
  %713 = vmatprep.subr.mxu0 0.0
  %714 = vmatpush1.msra.mxu0 0.0
  %715 = vmatprep.subr.mxu0 0.0
  %716 = vmatpush1.msra.mxu0 0.0
  %717 = vmatprep.subr.mxu0 0.0
  %718 = vmatpush1.msra.mxu0 0.0
  %719 = vmatprep.subr.mxu0 0.0
  %720 = vmatpush1.msra.mxu0 0.0
  %721 = vmatprep.subr.mxu0 0.0
  %722 = vmatpush1.msra.mxu0 0.0
  %723 = vmatprep.subr.mxu0 0.0
  %724 = vmatpush1.msra.mxu0 0.0
  %725 = vmatprep.subr.mxu0 0.0
  %726 = vmatpush1.msra.mxu0 0.0
  %727 = vmatprep.subr.mxu0 0.0
  %728 = vmatpush1.msra.mxu0 0.0
  %729 = vmatprep.subr.mxu0 0.0
  %730 = vmatpush1.msra.mxu0 0.0
  %731 = vmatprep.subr.mxu0 0.0
  %732 = vmatpush1.msra.mxu0 0.0
  %733 = vmatprep.subr.mxu0 0.0
  %734 = vmatpush1.msra.mxu0 0.0
  %735 = vmatprep.subr.mxu0 0.0
  %736 = vmatpush1.msra.mxu0 0.0
  %737 = vmatprep.subr.mxu0 0.0
  %738 = vmatpush1.msra.mxu0 0.0
  %739 = vmatprep.mubr.f32.mxu0 0.0
  %740 = vmatmul.mubr.f32.gmra.mrb[0].mxu0 %v619
  %v741 = vpop.f32.mrb[0].mxu0
  %v742 = vadd.f32 %v673, %v741
  %v743 = vpop.f32.mrb[0].mxu0
  %744 = vmatprep.mubr.f32.mxu0 0.0
  %745 = vmatmul.mubr.f32.gmra.mrb[0].mxu0 %v620
  %v746 = vpop.f32.mrb[0].mxu0
  %v747 = vadd.f32 %v673, %v746
  %v748 = vpop.f32.mrb[0].mxu0
  %749 = vmatprep.mubr.f32.mxu0 0.0
  %750 = vmatmul.mubr.f32.gmra.mrb[0].mxu0 %v651
  %v751 = vpop.f32.mrb[0].mxu0
  %v752 = vadd.f32 %v673, %v751
  %v753 = vpop.f32.mrb[0].mxu0
  %754 = vmatprep.mubr.f32.mxu0 0.0
  %755 = vmatmul.mubr.f32.gmra.mrb[0].mxu0 %v644
  %v756 = vpop.f32.mrb[0].mxu0
  %v757 = vadd.f32 %v673, %v756
  %v758 = vpop.f32.mrb[0].mxu0
  %759 = vmatprep.mubr.f32.mxu0 0.0
  %760 = vmatmul.mubr.f32.gmra.mrb[0].mxu0 %v646
  %v761 = vpop.f32.mrb[0].mxu0
  %v762 = vadd.f32 %v673, %v761
  %v763 = vpop.f32.mrb[0].mxu0
  %764 = vmatprep.mubr.f32.mxu0 0.0
  %765 = vmatmul.mubr.f32.gmra.mrb[0].mxu0 %v645
  %v766 = vpop.f32.mrb[0].mxu0
  %v767 = vadd.f32 %v673, %v766
  %v768 = vpop.f32.mrb[0].mxu0
  %769 = vdwg.mxu0
  %v770 = vmax.f32 %v742, 0.0
  %v771 = vmax.f32 %v747, 0.0
  %v772 = vmax.f32 %v752, 0.0
  %v773 = vmax.f32 %v757, 0.0
  %v774 = vmax.f32 %v762, 0.0
  %v775 = vmax.f32 %v767, 0.0
  %v776 = vsel %vm83, %v770, -inf
  %v777 = vsel %vm83, %v771, -inf
  %vm778 = vcmask 258048
  %v779 = vsel %vm778, %v772, -inf
  %v780 = vmax.f32 %v776, %v777
  %v781 = vmax.f32 %v780, %v779
  %v782 = vrot.slane %v781, 4
  %v783 = vmax.f32 %v781, %v782
  %v784 = vrot.slane %v783, 2
  %v785 = vmax.f32 %v783, %v784
  %v786 = vrot.slane %v785, 1
  %v787 = vmax.f32 %v785, %v786
  %vm788 = vcmask 261125
  %v789 = vsel %vm788, %v772, -inf
  %v790 = vsel %vm83, %v773, -inf
  %v791 = vsel %vm83, %v774, -inf
  %vm792 = vcmask 254976
  %v793 = vsel %vm792, %v775, -inf
  %v794 = vmax.f32 %v789, %v790
  %v795 = vmax.f32 %v791, %v793
  %v796 = vmax.f32 %v794, %v795
  %v797 = vrot.slane %v796, 4
  %v798 = vmax.f32 %v796, %v797
  %v799 = vrot.slane %v798, 2
  %v800 = vmax.f32 %v798, %v799
  %v801 = vrot.slane %v800, 1
  %v802 = vmax.f32 %v800, %v801
  %v803 = vsel %vm602, %v787, %v802
  %vm804 = vcmask 1043456
  %v805 = vrot.slane %v157, 4
  %v806 = vrot.slane %v250, 4
  %v807 = vsel %vm804, %v805, %v806
  %v808 = vrot.slane %v344, 4
  %v809 = vsel %vm804, %v806, %v808
  %v811 = vrot.slane %v162, 4
  %v812 = vrot.slane %v255, 4
  %v813 = vsel %vm804, %v811, %v812
  %v814 = vrot.slane %v349, 4
  %v815 = vsel %vm804, %v812, %v814
  %v816 = vrot.slane %v636, 4
  %v817 = vrot.slane %v813, 4
  %v818 = vrot.slane %v637, 4
  %v819 = vsel %vm804, %v816, %v818
  %v820 = vrot.slane %v815, 4
  %v821 = vsel %vm804, %v817, %v820
  %v822 = vrot.slane %v638, 4
  %v823 = vsel %vm804, %v818, %v822
  %v824 = vrot.slane %v814, 4
  %v825 = vsel %vm804, %v820, %v824
  %v830 = vsel %vm804, %v621, %v816
  %v831 = vsel %vm804, %v808, %v817
  %v832 = vld [vmem:[%s13] sm:$0xff]
  %v833 = vld [vmem:[%s13 + $0x8] sm:$0xff]
  %v834 = vld [vmem:[%s13 + $0x10] sm:$0xff]
  %v835 = vld [vmem:[%s13 + $0x18] sm:$0xff]
  %v836 = vld [vmem:[%s13 + $0x20] sm:$0xff]
  %v837 = vld [vmem:[%s13 + $0x28] sm:$0xff]
  %v838 = vld [vmem:[%s13 + $0x30] sm:$0xff]
  %v839 = vld [vmem:[%s13 + $0x38] sm:$0xff]
  %v840 = vld [vmem:[%s13 + $0x40] sm:$0xff]
  %v841 = vld [vmem:[%s13 + $0x48] sm:$0xff]
  %v842 = vld [vmem:[%s13 + $0x50] sm:$0xff]
  %v843 = vld [vmem:[%s13 + $0x58] sm:$0xff]
  %v844 = vld [vmem:[%s13 + $0x60] sm:$0xff]
  %v845 = vld [vmem:[%s13 + $0x68] sm:$0xff]
  %v846 = vld [vmem:[%s13 + $0x70] sm:$0xff]
  %v847 = vld [vmem:[%s13 + $0x78] sm:$0xff]
  %v848 = vld [vmem:[%s13 + $0x80] sm:$0xff]
  %v849 = vld [vmem:[%s13 + $0x88] sm:$0xff]
  %v850 = vld [vmem:[%s13 + $0x90] sm:$0xff]
  %v851 = vld [vmem:[%s13 + $0x98] sm:$0xff]
  %v852 = vld [vmem:[%s14] sm:$0x1]
  %v854 = vlaneseq
  %v855 = vshrl.u32 %v854, 7
  %v856 = vsub.s32 0, %v855
  %v857 = vrot.slane %v852, %v856
  %v859 = vsel %vm83, %v807, 0
  %v861 = vsel %vm83, %v809, 0
  %v864 = vsel %vm83, %v831, 0
  %v866 = vsel %vm83, %v821, 0
  %v868 = vsel %vm83, %v825, 0
  %870 = vmatprep.subr.mxu0 0.0
  %871 = vmatpush1.msra.mxu0 %v832
  %872 = vmatprep.subr.mxu0 0.0
  %873 = vmatpush1.msra.mxu0 %v833
  %874 = vmatprep.subr.mxu0 0.0
  %875 = vmatpush1.msra.mxu0 %v834
  %876 = vmatprep.subr.mxu0 0.0
  %877 = vmatpush1.msra.mxu0 %v835
  %878 = vmatprep.subr.mxu0 0.0
  %879 = vmatpush1.msra.mxu0 %v836
  %880 = vmatprep.subr.mxu0 0.0
  %881 = vmatpush1.msra.mxu0 %v837
  %882 = vmatprep.subr.mxu0 0.0
  %883 = vmatpush1.msra.mxu0 %v838
  %884 = vmatprep.subr.mxu0 0.0
  %885 = vmatpush1.msra.mxu0 %v839
  %886 = vmatprep.subr.mxu0 0.0
  %887 = vmatpush1.msra.mxu0 %v840
  %888 = vmatprep.subr.mxu0 0.0
  %889 = vmatpush1.msra.mxu0 %v841
  %890 = vmatprep.subr.mxu0 0.0
  %891 = vmatpush1.msra.mxu0 %v842
  %892 = vmatprep.subr.mxu0 0.0
  %893 = vmatpush1.msra.mxu0 %v843
  %894 = vmatprep.subr.mxu0 0.0
  %895 = vmatpush1.msra.mxu0 %v844
  %896 = vmatprep.subr.mxu0 0.0
  %897 = vmatpush1.msra.mxu0 %v845
  %898 = vmatprep.subr.mxu0 0.0
  %899 = vmatpush1.msra.mxu0 %v846
  %900 = vmatprep.subr.mxu0 0.0
  %901 = vmatpush1.msra.mxu0 %v847
  %902 = vmatprep.subr.mxu0 0.0
  %903 = vmatpush1.msra.mxu0 %v848
  %904 = vmatprep.subr.mxu0 0.0
  %905 = vmatpush1.msra.mxu0 %v849
  %906 = vmatprep.subr.mxu0 0.0
  %907 = vmatpush1.msra.mxu0 %v850
  %908 = vmatprep.subr.mxu0 0.0
  %909 = vmatpush1.msra.mxu0 %v851
  %910 = vmatprep.subr.mxu0 0.0
  %911 = vmatpush1.msra.mxu0 0.0
  %912 = vmatprep.subr.mxu0 0.0
  %913 = vmatpush1.msra.mxu0 0.0
  %914 = vmatprep.subr.mxu0 0.0
  %915 = vmatpush1.msra.mxu0 0.0
  %916 = vmatprep.subr.mxu0 0.0
  %917 = vmatpush1.msra.mxu0 0.0
  %918 = vmatprep.subr.mxu0 0.0
  %919 = vmatpush1.msra.mxu0 0.0
  %920 = vmatprep.subr.mxu0 0.0
  %921 = vmatpush1.msra.mxu0 0.0
  %922 = vmatprep.subr.mxu0 0.0
  %923 = vmatpush1.msra.mxu0 0.0
  %924 = vmatprep.subr.mxu0 0.0
  %925 = vmatpush1.msra.mxu0 0.0
  %926 = vmatprep.subr.mxu0 0.0
  %927 = vmatpush1.msra.mxu0 0.0
  %928 = vmatprep.subr.mxu0 0.0
  %929 = vmatpush1.msra.mxu0 0.0
  %930 = vmatprep.subr.mxu0 0.0
  %931 = vmatpush1.msra.mxu0 0.0
  %932 = vmatprep.subr.mxu0 0.0
  %933 = vmatpush1.msra.mxu0 0.0
  %934 = vmatprep.mubr.f32.mxu0 %v859
  %935 = vmatmul.mubr.f32.gmra.mrb[0].mxu0 %v619
  %v936 = vpop.f32.mrb[0].mxu0
  %v937 = vadd.f32 %v857, %v936
  %v938 = vpop.f32.mrb[0].mxu0
  %939 = vmatprep.mubr.f32.mxu0 %v861
  %940 = vmatmul.mubr.f32.gmra.mrb[0].mxu0 %v620
  %v941 = vpop.f32.mrb[0].mxu0
  %v942 = vadd.f32 %v857, %v941
  %v943 = vpop.f32.mrb[0].mxu0
  %944 = vmatprep.mubr.f32.mxu0 %v864
  %945 = vmatmul.mubr.f32.gmra.mrb[0].mxu0 %v830
  %v946 = vpop.f32.mrb[0].mxu0
  %v947 = vadd.f32 %v857, %v946
  %v948 = vpop.f32.mrb[0].mxu0
  %949 = vmatprep.mubr.f32.mxu0 %v866
  %950 = vmatmul.mubr.f32.gmra.mrb[0].mxu0 %v819
  %v951 = vpop.f32.mrb[0].mxu0
  %v952 = vadd.f32 %v857, %v951
  %v953 = vpop.f32.mrb[0].mxu0
  %954 = vmatprep.mubr.f32.mxu0 %v868
  %955 = vmatmul.mubr.f32.gmra.mrb[0].mxu0 %v823
  %v956 = vpop.f32.mrb[0].mxu0
  %v957 = vadd.f32 %v857, %v956
  %v958 = vpop.f32.mrb[0].mxu0
  %959 = vdwg.mxu0
  %v960 = vmax.f32 %v937, 0.0
  %v961 = vmax.f32 %v942, 0.0
  %v962 = vmax.f32 %v947, 0.0
  %v963 = vmax.f32 %v952, 0.0
  %v964 = vmax.f32 %v957, 0.0
  %v965 = vsel %vm83, %v960, -inf
  %v966 = vsel %vm83, %v961, -inf
  %v967 = vsel %vm591, %v962, -inf
  %v968 = vmax.f32 %v965, %v966
  %v969 = vmax.f32 %v968, %v967
  %v970 = vrot.slane %v969, 4
  %v971 = vmax.f32 %v969, %v970
  %v972 = vrot.slane %v971, 2
  %v973 = vmax.f32 %v971, %v972
  %v974 = vrot.slane %v973, 1
  %v975 = vmax.f32 %v973, %v974
  %vm976 = vcmask 261124
  %v977 = vsel %vm976, %v962, -inf
  %v978 = vsel %vm83, %v963, -inf
  %v979 = vsel %vm83, %v964, -inf
  %v980 = vmax.f32 %v977, %v978
  %v981 = vmax.f32 %v980, %v979
  %v982 = vrot.slane %v981, 4
  %v983 = vmax.f32 %v981, %v982
  %v984 = vrot.slane %v983, 2
  %v985 = vmax.f32 %v983, %v984
  %v986 = vrot.slane %v985, 1
  %v987 = vmax.f32 %v985, %v986
  %v988 = vsel %vm602, %v975, %v987
  %990 = vrot.lane.b32.xlu0 %v803, 32
  %v991 = vpop.permute.xlu0 %990
  %994 = vrot.lane.b32.xlu0 %v988, 64
  %v995 = vpop.permute.xlu0 %994
  %v997 = vsel %vm83, %v603, %v991
  %v998 = vsel %vm388, %v997, %v995
  %v999 = vld [vmem:[%s15] sm:$0xff]
  %v1000 = vld [vmem:[%s15 + $0x8] sm:$0xff]
  %v1001 = vld [vmem:[%s15 + $0x10] sm:$0xff]
  %v1002 = vld [vmem:[%s15 + $0x18] sm:$0xff]
  %v1003 = vld [vmem:[%s15 + $0x20] sm:$0xff]
  %v1004 = vld [vmem:[%s15 + $0x28] sm:$0xff]
  %v1005 = vld [vmem:[%s15 + $0x30] sm:$0xff]
  %v1006 = vld [vmem:[%s15 + $0x38] sm:$0xff]
  %v1007 = vld [vmem:[%s15 + $0x40] sm:$0xff]
  %v1008 = vld [vmem:[%s15 + $0x48] sm:$0xff]
  %v1009 = vld [vmem:[%s15 + $0x50] sm:$0xff]
  %v1010 = vld [vmem:[%s15 + $0x58] sm:$0xff]
  %v1011 = vld [vmem:[%s16] sm:$0x1]
  %v1013 = vlaneseq
  %v1014 = vshrl.u32 %v1013, 7
  %v1015 = vsub.s32 0, %v1014
  %v1016 = vrot.slane %v1011, %v1015
  %v1019 = vsel %vm458, %v998, 0
  %1021 = vmatprep.subr.mxu0 0.0
  %1022 = vmatpush1.msra.mxu0 %v999
  %1023 = vmatprep.subr.mxu0 0.0
  %1024 = vmatpush1.msra.mxu0 %v1000
  %1025 = vmatprep.subr.mxu0 0.0
  %1026 = vmatpush1.msra.mxu0 %v1001
  %1027 = vmatprep.subr.mxu0 0.0
  %1028 = vmatpush1.msra.mxu0 %v1002
  %1029 = vmatprep.subr.mxu0 0.0
  %1030 = vmatpush1.msra.mxu0 %v1003
  %1031 = vmatprep.subr.mxu0 0.0
  %1032 = vmatpush1.msra.mxu0 %v1004
  %1033 = vmatprep.subr.mxu0 0.0
  %1034 = vmatpush1.msra.mxu0 %v1005
  %1035 = vmatprep.subr.mxu0 0.0
  %1036 = vmatpush1.msra.mxu0 %v1006
  %1037 = vmatprep.subr.mxu0 0.0
  %1038 = vmatpush1.msra.mxu0 %v1007
  %1039 = vmatprep.subr.mxu0 0.0
  %1040 = vmatpush1.msra.mxu0 %v1008
  %1041 = vmatprep.subr.mxu0 0.0
  %1042 = vmatpush1.msra.mxu0 %v1009
  %1043 = vmatprep.subr.mxu0 0.0
  %1044 = vmatpush1.msra.mxu0 %v1010
  %1045 = vmatprep.subr.mxu0 0.0
  %1046 = vmatpush1.msra.mxu0 0.0
  %1047 = vmatprep.subr.mxu0 0.0
  %1048 = vmatpush1.msra.mxu0 0.0
  %1049 = vmatprep.subr.mxu0 0.0
  %1050 = vmatpush1.msra.mxu0 0.0
  %1051 = vmatprep.subr.mxu0 0.0
  %1052 = vmatpush1.msra.mxu0 0.0
  %1053 = vmatprep.subr.mxu0 0.0
  %1054 = vmatpush1.msra.mxu0 0.0
  %1055 = vmatprep.subr.mxu0 0.0
  %1056 = vmatpush1.msra.mxu0 0.0
  %1057 = vmatprep.subr.mxu0 0.0
  %1058 = vmatpush1.msra.mxu0 0.0
  %1059 = vmatprep.subr.mxu0 0.0
  %1060 = vmatpush1.msra.mxu0 0.0
  %1061 = vmatprep.subr.mxu0 0.0
  %1062 = vmatpush1.msra.mxu0 0.0
  %1063 = vmatprep.subr.mxu0 0.0
  %1064 = vmatpush1.msra.mxu0 0.0
  %1065 = vmatprep.subr.mxu0 0.0
  %1066 = vmatpush1.msra.mxu0 0.0
  %1067 = vmatprep.subr.mxu0 0.0
  %1068 = vmatpush1.msra.mxu0 0.0
  %1069 = vmatprep.subr.mxu0 0.0
  %1070 = vmatpush1.msra.mxu0 0.0
  %1071 = vmatprep.subr.mxu0 0.0
  %1072 = vmatpush1.msra.mxu0 0.0
  %1073 = vmatprep.subr.mxu0 0.0
  %1074 = vmatpush1.msra.mxu0 0.0
  %1075 = vmatprep.subr.mxu0 0.0
  %1076 = vmatpush1.msra.mxu0 0.0
  %1077 = vmatprep.subr.mxu0 0.0
  %1078 = vmatpush1.msra.mxu0 0.0
  %1079 = vmatprep.subr.mxu0 0.0
  %1080 = vmatpush1.msra.mxu0 0.0
  %1081 = vmatprep.subr.mxu0 0.0
  %1082 = vmatpush1.msra.mxu0 0.0
  %1083 = vmatprep.subr.mxu0 0.0
  %1084 = vmatpush1.msra.mxu0 0.0
  %1085 = vmatprep.mubr.f32.mxu0 0.0
  %1086 = vmatmul.mubr.f32.gmra.mrb[0].mxu0 %v1019
  %v1087 = vpop.f32.mrb[0].mxu0
  %v1088 = vadd.f32 %v1016, %v1087
  %v1089 = vpop.f32.mrb[0].mxu0
  %1090 = vdwg.mxu0
  %v1091 = vmax.f32 %v1088, 0.0
  %v1092 = vld [vmem:[%s17] sm:$0xff]
  %v1093 = vld [vmem:[%s17 + $0x8] sm:$0xff]
  %v1094 = vld [vmem:[%s17 + $0x10] sm:$0xff]
  %v1095 = vld [vmem:[%s17 + $0x18] sm:$0xff]
  %v1096 = vld [vmem:[%s18] sm:$0x1]
  %v1098 = vlaneseq
  %v1099 = vshrl.u32 %v1098, 7
  %v1100 = vsub.s32 0, %v1099
  %v1101 = vrot.slane %v1096, %v1100
  %v1104 = vsel %vm83, %v1091, 0
  %1106 = vmatprep.subr.mxu0 0.0
  %1107 = vmatpush1.msra.mxu0 %v1092
  %1108 = vmatprep.subr.mxu0 0.0
  %1109 = vmatpush1.msra.mxu0 %v1093
  %1110 = vmatprep.subr.mxu0 0.0
  %1111 = vmatpush1.msra.mxu0 %v1094
  %1112 = vmatprep.subr.mxu0 0.0
  %1113 = vmatpush1.msra.mxu0 %v1095
  %1114 = vmatprep.subr.mxu0 0.0
  %1115 = vmatpush1.msra.mxu0 0.0
  %1116 = vmatprep.subr.mxu0 0.0
  %1117 = vmatpush1.msra.mxu0 0.0
  %1118 = vmatprep.subr.mxu0 0.0
  %1119 = vmatpush1.msra.mxu0 0.0
  %1120 = vmatprep.subr.mxu0 0.0
  %1121 = vmatpush1.msra.mxu0 0.0
  %1122 = vmatprep.subr.mxu0 0.0
  %1123 = vmatpush1.msra.mxu0 0.0
  %1124 = vmatprep.subr.mxu0 0.0
  %1125 = vmatpush1.msra.mxu0 0.0
  %1126 = vmatprep.subr.mxu0 0.0
  %1127 = vmatpush1.msra.mxu0 0.0
  %1128 = vmatprep.subr.mxu0 0.0
  %1129 = vmatpush1.msra.mxu0 0.0
  %1130 = vmatprep.subr.mxu0 0.0
  %1131 = vmatpush1.msra.mxu0 0.0
  %1132 = vmatprep.subr.mxu0 0.0
  %1133 = vmatpush1.msra.mxu0 0.0
  %1134 = vmatprep.subr.mxu0 0.0
  %1135 = vmatpush1.msra.mxu0 0.0
  %1136 = vmatprep.subr.mxu0 0.0
  %1137 = vmatpush1.msra.mxu0 0.0
  %1138 = vmatprep.subr.mxu0 0.0
  %1139 = vmatpush1.msra.mxu0 0.0
  %1140 = vmatprep.subr.mxu0 0.0
  %1141 = vmatpush1.msra.mxu0 0.0
  %1142 = vmatprep.subr.mxu0 0.0
  %1143 = vmatpush1.msra.mxu0 0.0
  %1144 = vmatprep.subr.mxu0 0.0
  %1145 = vmatpush1.msra.mxu0 0.0
  %1146 = vmatprep.subr.mxu0 0.0
  %1147 = vmatpush1.msra.mxu0 0.0
  %1148 = vmatprep.subr.mxu0 0.0
  %1149 = vmatpush1.msra.mxu0 0.0
  %1150 = vmatprep.subr.mxu0 0.0
  %1151 = vmatpush1.msra.mxu0 0.0
  %1152 = vmatprep.subr.mxu0 0.0
  %1153 = vmatpush1.msra.mxu0 0.0
  %1154 = vmatprep.subr.mxu0 0.0
  %1155 = vmatpush1.msra.mxu0 0.0
  %1156 = vmatprep.subr.mxu0 0.0
  %1157 = vmatpush1.msra.mxu0 0.0
  %1158 = vmatprep.subr.mxu0 0.0
  %1159 = vmatpush1.msra.mxu0 0.0
  %1160 = vmatprep.subr.mxu0 0.0
  %1161 = vmatpush1.msra.mxu0 0.0
  %1162 = vmatprep.subr.mxu0 0.0
  %1163 = vmatpush1.msra.mxu0 0.0
  %1164 = vmatprep.subr.mxu0 0.0
  %1165 = vmatpush1.msra.mxu0 0.0
  %1166 = vmatprep.subr.mxu0 0.0
  %1167 = vmatpush1.msra.mxu0 0.0
  %1168 = vmatprep.subr.mxu0 0.0
  %1169 = vmatpush1.msra.mxu0 0.0
  %1170 = vmatprep.mubr.f32.mxu0 0.0
  %1171 = vmatmul.mubr.f32.gmra.mrb[0].mxu0 %v1104
  %v1172 = vpop.f32.mrb[0].mxu0
  %v1173 = vadd.f32 %v1101, %v1172
  %v1174 = vpop.f32.mrb[0].mxu0
  %1175 = vdwg.mxu0
  %v1176 = vmax.f32 %v1173, 0.0
  %v1177 = vld [vmem:[%s19] sm:$0xff]
  %v1178 = vld [vmem:[%s19 + $0x8] sm:$0xff]
  %v1179 = vld [vmem:[#allocation2] sm:$0x1]
  %v1181 = vlaneseq
  %v1182 = vshrl.u32 %v1181, 7
  %v1183 = vsub.s32 0, %v1182
  %v1184 = vrot.slane %v1179, %v1183
  %v1187 = vsel %vm176, %v1176, 0
  %1189 = vmatprep.subr.mxu0 0.0
  %1190 = vmatpush1.msra.mxu0 %v1177
  %1191 = vmatprep.subr.mxu0 0.0
  %1192 = vmatpush1.msra.mxu0 %v1178
  %1193 = vmatprep.subr.mxu0 0.0
  %1194 = vmatpush1.msra.mxu0 0.0
  %1195 = vmatprep.subr.mxu0 0.0
  %1196 = vmatpush1.msra.mxu0 0.0
  %1197 = vmatprep.subr.mxu0 0.0
  %1198 = vmatpush1.msra.mxu0 0.0
  %1199 = vmatprep.subr.mxu0 0.0
  %1200 = vmatpush1.msra.mxu0 0.0
  %1201 = vmatprep.subr.mxu0 0.0
  %1202 = vmatpush1.msra.mxu0 0.0
  %1203 = vmatprep.subr.mxu0 0.0
  %1204 = vmatpush1.msra.mxu0 0.0
  %1205 = vmatprep.subr.mxu0 0.0
  %1206 = vmatpush1.msra.mxu0 0.0
  %1207 = vmatprep.subr.mxu0 0.0
  %1208 = vmatpush1.msra.mxu0 0.0
  %1209 = vmatprep.subr.mxu0 0.0
  %1210 = vmatpush1.msra.mxu0 0.0
  %1211 = vmatprep.subr.mxu0 0.0
  %1212 = vmatpush1.msra.mxu0 0.0
  %1213 = vmatprep.subr.mxu0 0.0
  %1214 = vmatpush1.msra.mxu0 0.0
  %1215 = vmatprep.subr.mxu0 0.0
  %1216 = vmatpush1.msra.mxu0 0.0
  %1217 = vmatprep.subr.mxu0 0.0
  %1218 = vmatpush1.msra.mxu0 0.0
  %1219 = vmatprep.subr.mxu0 0.0
  %1220 = vmatpush1.msra.mxu0 0.0
  %1221 = vmatprep.subr.mxu0 0.0
  %1222 = vmatpush1.msra.mxu0 0.0
  %1223 = vmatprep.subr.mxu0 0.0
  %1224 = vmatpush1.msra.mxu0 0.0
  %1225 = vmatprep.subr.mxu0 0.0
  %1226 = vmatpush1.msra.mxu0 0.0
  %1227 = vmatprep.subr.mxu0 0.0
  %1228 = vmatpush1.msra.mxu0 0.0
  %1229 = vmatprep.subr.mxu0 0.0
  %1230 = vmatpush1.msra.mxu0 0.0
  %1231 = vmatprep.subr.mxu0 0.0
  %1232 = vmatpush1.msra.mxu0 0.0
  %1233 = vmatprep.subr.mxu0 0.0
  %1234 = vmatpush1.msra.mxu0 0.0
  %1235 = vmatprep.subr.mxu0 0.0
  %1236 = vmatpush1.msra.mxu0 0.0
  %1237 = vmatprep.subr.mxu0 0.0
  %1238 = vmatpush1.msra.mxu0 0.0
  %1239 = vmatprep.subr.mxu0 0.0
  %1240 = vmatpush1.msra.mxu0 0.0
  %1241 = vmatprep.subr.mxu0 0.0
  %1242 = vmatpush1.msra.mxu0 0.0
  %1243 = vmatprep.subr.mxu0 0.0
  %1244 = vmatpush1.msra.mxu0 0.0
  %1245 = vmatprep.subr.mxu0 0.0
  %1246 = vmatpush1.msra.mxu0 0.0
  %1247 = vmatprep.subr.mxu0 0.0
  %1248 = vmatpush1.msra.mxu0 0.0
  %1249 = vmatprep.subr.mxu0 0.0
  %1250 = vmatpush1.msra.mxu0 0.0
  %1251 = vmatprep.subr.mxu0 0.0
  %1252 = vmatpush1.msra.mxu0 0.0
  %1253 = vmatprep.mubr.f32.mxu0 0.0
  %1254 = vmatmul.mubr.f32.gmra.mrb[0].mxu0 %v1187
  %v1255 = vpop.f32.mrb[0].mxu0
  %v1256 = vadd.f32 %v1184, %v1255
  %v1257 = vpop.f32.mrb[0].mxu0
  %1258 = vdwg.mxu0
  %vm1259 = vcmask 1024
  %1260 = vst.msk [vmem:[%s21] sm:$0x3] %vm1259, %v1256
  // Predicated region
  $region86: #{tpu_custom_call.1} parent=0 // pred_check
    _
  $region87: #{tpu_custom_call.1} parent=0 // pred_check_branch
    %1262 = sbr.rel (0) target = $region89
  $region88: #{tpu_custom_call.1} parent=0 // pred_region
    _
  $region89: #{tpu_custom_call.1} parent=0 // pred_fallthru
    _
  // Predicated region
  $region90: #{tpu_custom_call.1} parent=0 // pred_check
    _
  $region91: #{tpu_custom_call.1} parent=0 // pred_check_branch
    %1264 = sbr.rel (0) target = $region93
  $region92: #{tpu_custom_call.1} parent=0 // pred_region
    _
  $region93: #{tpu_custom_call.1} parent=0 // pred_fallthru
    _

</llo_original>
